<compile_context>
chip_gen: v7x
topology: tpu7x:2x2x1
jax: 0.10.0
libtpu: 0.0.40
codegen_flags: <defaults>
</compile_context>

<pallas_src>
import functools

import jax
import jax.numpy as jnp
from jax.experimental import pallas as pl
from jax.experimental.pallas import tpu as pltpu

_HIGHEST = jax.lax.Precision.HIGHEST


def _round_up(x, m):
    return (x + m - 1) // m * m


def _vmem_capacity_bytes():
    try:
        return int(pltpu.get_tpu_info().vmem_capacity_bytes)
    except Exception:
        return 64 << 20  # conservative fallback: v7x physical VMEM


def filter_net_kernel(w1_ref, b1_ref, w2_ref, b2_ref, w3_ref, b3_ref, x_ref, o_ref):
    # x_ref: (7, TB) -- features on sublanes, batch on lanes (lane-dense).
    x = x_ref[...]

    h1 = jnp.tanh(
        jnp.dot(w1_ref[...], x, precision=_HIGHEST, preferred_element_type=jnp.float32)
        + b1_ref[...]
    )                                                  # (16, TB)
    h2 = jnp.tanh(
        jnp.dot(w2_ref[...], h1, precision=_HIGHEST, preferred_element_type=jnp.float32)
        + b2_ref[...]
    )                                                  # (8, TB)
    out = (
        jnp.dot(w3_ref[...], h2, precision=_HIGHEST, preferred_element_type=jnp.float32)
        + b3_ref[...]
    )                                                  # (1, TB)
    o_ref[...] = out.astype(o_ref.dtype)               # lane-dense store


@functools.partial(jax.jit, static_argnames=("block_b",))
def filter_network(x, params, block_b=32768):
    """x: (B, 7) float32 -> (B, 1) float32. params are PyTorch-style (out, in) weights."""
    w1, b1, w2, b2, w3, b3 = params
    B = x.shape[0]

    block_b = max(128, (block_b // 128) * 128)

    # Per-generation VMEM budget: <= half of physical VMEM, never above 64 MiB.
    # Footprint per lane-column ~384 B: double-buffered (8-sublane-padded) (7,tb) in and
    # (1,tb) out tiles + f32 h1/h2/pre-activation temporaries, with slack.
    budget = min(_vmem_capacity_bytes() // 2, 64 << 20)
    bytes_per_lane = 384
    tb_cap = max(128, ((budget - (2 << 20)) // bytes_per_lane) // 128 * 128)

    tb = min(block_b, tb_cap, _round_up(B, 128))
    if B > 256 and pl.cdiv(B, tb) < 2:
        # Ensure >=2 grid steps so ("parallel",) can shard over both v7x TensorCores.
        tb = _round_up(pl.cdiv(B, 2), 128)
    grid_b = pl.cdiv(B, tb)

    # Single XLA transpose; no zero-fill/dynamic-update-slice pre-pass. Pallas masks the
    # ragged last block on writeback, so out-of-bounds lanes (garbage input) are discarded.
    xt = x.T                                           # (7, B)
    bp = B
    if grid_b == 1 and B < tb:
        # Tiny-batch case only: pad to one full lane tile (negligible cost).
        bp = tb
        xt = jnp.pad(xt, ((0, 0), (0, tb - B)))

    vmem_limit = int(min(budget, bytes_per_lane * tb + (2 << 20)))

    cost = pl.CostEstimate(
        flops=int(2 * (7 * 16 + 16 * 8 + 8 * 1) * B),  # ~500 flops / element
        transcendentals=int(24 * B),                   # 16 + 8 tanh / element
        bytes_accessed=int(32 * B + 1024),             # 28 B read + 4 B write / element
    )

    out_t = pl.pallas_call(
        filter_net_kernel,
        out_shape=jax.ShapeDtypeStruct((1, bp), jnp.float32),
        grid=(grid_b,),
        in_specs=[
            pl.BlockSpec((16, 7), lambda i: (0, 0)),   # resident params (DMA'd once)
            pl.BlockSpec((16, 1), lambda i: (0, 0)),
            pl.BlockSpec((8, 16), lambda i: (0, 0)),
            pl.BlockSpec((8, 1), lambda i: (0, 0)),
            pl.BlockSpec((1, 8), lambda i: (0, 0)),
            pl.BlockSpec((1, 1), lambda i: (0, 0)),
            pl.BlockSpec((7, tb), lambda i: (0, i)),   # batch-tiled, lane-dense input
        ],
        out_specs=pl.BlockSpec((1, tb), lambda i: (0, i)),
        compiler_params=pltpu.CompilerParams(
            dimension_semantics=("parallel",),
            vmem_limit_bytes=vmem_limit,
        ),
        cost_estimate=cost,
    )(w1, b1[:, None], w2, b2[:, None], w3, b3[:, None], xt)

    return out_t[:, :B].T                              # (B, 1)


def init_params(key):
    """Deterministic init mimicking nn.Linear default U(-1/sqrt(fan_in), 1/sqrt(fan_in)).

    Weights stored PyTorch-style as (out_features, in_features), biases as (out_features,).
    """
    dims = [(7, 16), (16, 8), (8, 1)]
    params = []
    for fan_in, fan_out in dims:
        key, kw, kb = jax.random.split(key, 3)
        bound = 1.0 / jnp.sqrt(float(fan_in))
        w = jax.random.uniform(kw, (fan_out, fan_in), jnp.float32, -bound, bound)
        b = jax.random.uniform(kb, (fan_out,), jnp.float32, -bound, bound)
        params += [w, b]
    return tuple(params)


def reference(x, params):
    w1, b1, w2, b2, w3, b3 = params
    h = jnp.tanh(jnp.dot(x, w1.T, precision=_HIGHEST) + b1)
    h = jnp.tanh(jnp.dot(h, w2.T, precision=_HIGHEST) + b2)
    return jnp.dot(h, w3.T, precision=_HIGHEST) + b3


if __name__ == "__main__":
    key = jax.random.PRNGKey(0)
    key, kx = jax.random.split(key)
    params = init_params(key)

    # Small, single-tile case (batch smaller than one lane tile -> padded once).
    B = 8
    x = jax.random.normal(kx, (B, 7), dtype=jnp.float32)
    out = jax.block_until_ready(filter_network(x, params))
    ref = reference(x, params)
    assert out.shape == (B, 1)
    assert jnp.allclose(out, ref, atol=1e-5, rtol=1e-5)

    # Default tiling with B=300: splits into 2 grid steps with a ragged (masked) last block.
    key, kx2 = jax.random.split(key)
    B2 = 300
    x2 = jax.random.normal(kx2, (B2, 7), dtype=jnp.float32)
    out2 = jax.block_until_ready(filter_network(x2, params))
    ref2 = reference(x2, params)
    assert out2.shape == (B2, 1)
    assert jnp.allclose(out2, ref2, atol=1e-5, rtol=1e-5)

    # Explicit small tile exercising 3 grid steps + ragged last block.
    out3 = jax.block_until_ready(filter_network(x2, params, block_b=128))
    assert jnp.allclose(out3, ref2, atol=1e-5, rtol=1e-5)

    print("KERNEL_OK")
</pallas_src>

<mosaic_0001>
module attributes {stable_mosaic.version = 11 : i64} {
  func.func @filter_net_kernel(%arg0: i32, %arg1: memref<16x7xf32, #tpu.memory_space<vmem>>, %arg2: memref<16x1xf32, #tpu.memory_space<vmem>>, %arg3: memref<8x16xf32, #tpu.memory_space<vmem>>, %arg4: memref<8x1xf32, #tpu.memory_space<vmem>>, %arg5: memref<1x8xf32, #tpu.memory_space<vmem>>, %arg6: memref<1x1xf32, #tpu.memory_space<vmem>>, %arg7: memref<7x128xf32, #tpu.memory_space<vmem>>, %arg8: memref<1x128xf32, #tpu.memory_space<vmem>>) attributes {dimension_semantics = [#tpu.dimension_semantics<parallel>], iteration_bounds = array<i64: 1>, scalar_prefetch = 0 : i64, scratch_operands = 0 : i64, tpu.core_type = #tpu.core_type<tc>, window_params = [{pipeline_mode = #tpu.pipeline_mode<synchronous>, transform_indices = @transform_0, window_bounds = array<i64: 16, 7>}, {pipeline_mode = #tpu.pipeline_mode<synchronous>, transform_indices = @transform_1, window_bounds = array<i64: 16, 1>}, {pipeline_mode = #tpu.pipeline_mode<synchronous>, transform_indices = @transform_2, window_bounds = array<i64: 8, 16>}, {pipeline_mode = #tpu.pipeline_mode<synchronous>, transform_indices = @transform_3, window_bounds = array<i64: 8, 1>}, {pipeline_mode = #tpu.pipeline_mode<synchronous>, transform_indices = @transform_4, window_bounds = array<i64: 1, 8>}, {pipeline_mode = #tpu.pipeline_mode<synchronous>, transform_indices = @transform_5, window_bounds = array<i64: 1, 1>}, {transform_indices = @transform_6, window_bounds = array<i64: 7, 128>}, {transform_indices = @transform_7, window_bounds = array<i64: 1, 128>}]} {
    %c0 = arith.constant 0 : index
    %c0_0 = arith.constant 0 : index
    %0 = vector.load %arg7[%c0, %c0_0] : memref<7x128xf32, #tpu.memory_space<vmem>>, vector<7x128xf32>
    %c0_1 = arith.constant 0 : index
    %c0_2 = arith.constant 0 : index
    %1 = vector.load %arg1[%c0_1, %c0_2] : memref<16x7xf32, #tpu.memory_space<vmem>>, vector<16x7xf32>
    %cst = arith.constant dense<0.000000e+00> : vector<16x128xf32>
    %2 = tpu.matmul %1, %0, %cst {dimension_numbers = #tpu.dot_dimension_numbers<[1], [0], [0], [1], [0, 0, 1, 1], [], []>, precision = #tpu.contract_precision<fp32>} : vector<16x7xf32>, vector<7x128xf32>, vector<16x128xf32> -> vector<16x128xf32>
    %c0_3 = arith.constant 0 : index
    %c0_4 = arith.constant 0 : index
    %3 = vector.load %arg2[%c0_3, %c0_4] : memref<16x1xf32, #tpu.memory_space<vmem>>, vector<16x1xf32>
    %4 = vector.broadcast %3 : vector<16x1xf32> to vector<16x128xf32>
    %5 = arith.addf %2, %4 : vector<16x128xf32>
    %6 = math.tanh %5 : vector<16x128xf32>
    %c0_5 = arith.constant 0 : index
    %c0_6 = arith.constant 0 : index
    %7 = vector.load %arg3[%c0_5, %c0_6] : memref<8x16xf32, #tpu.memory_space<vmem>>, vector<8x16xf32>
    %cst_7 = arith.constant dense<0.000000e+00> : vector<8x128xf32>
    %8 = tpu.matmul %7, %6, %cst_7 {dimension_numbers = #tpu.dot_dimension_numbers<[1], [0], [0], [1], [0, 0, 1, 1], [], []>, precision = #tpu.contract_precision<fp32>} : vector<8x16xf32>, vector<16x128xf32>, vector<8x128xf32> -> vector<8x128xf32>
    %c0_8 = arith.constant 0 : index
    %c0_9 = arith.constant 0 : index
    %9 = vector.load %arg4[%c0_8, %c0_9] : memref<8x1xf32, #tpu.memory_space<vmem>>, vector<8x1xf32>
    %10 = vector.broadcast %9 : vector<8x1xf32> to vector<8x128xf32>
    %11 = arith.addf %8, %10 : vector<8x128xf32>
    %12 = math.tanh %11 : vector<8x128xf32>
    %c0_10 = arith.constant 0 : index
    %c0_11 = arith.constant 0 : index
    %13 = vector.load %arg5[%c0_10, %c0_11] : memref<1x8xf32, #tpu.memory_space<vmem>>, vector<1x8xf32>
    %cst_12 = arith.constant dense<0.000000e+00> : vector<1x128xf32>
    %14 = tpu.matmul %13, %12, %cst_12 {dimension_numbers = #tpu.dot_dimension_numbers<[1], [0], [0], [1], [0, 0, 1, 1], [], []>, precision = #tpu.contract_precision<fp32>} : vector<1x8xf32>, vector<8x128xf32>, vector<1x128xf32> -> vector<1x128xf32>
    %c0_13 = arith.constant 0 : index
    %c0_14 = arith.constant 0 : index
    %15 = vector.load %arg6[%c0_13, %c0_14] : memref<1x1xf32, #tpu.memory_space<vmem>>, vector<1x1xf32>
    %16 = vector.broadcast %15 : vector<1x1xf32> to vector<1x128xf32>
    %17 = arith.addf %14, %16 : vector<1x128xf32>
    %c0_15 = arith.constant 0 : index
    %c0_16 = arith.constant 0 : index
    %18 = vector.load %arg8[%c0_15, %c0_16] : memref<1x128xf32, #tpu.memory_space<vmem>>, vector<1x128xf32>
    tpu.vector_store %arg8[%c0_15, %c0_16], %17 {strides = array<i32>} : memref<1x128xf32, #tpu.memory_space<vmem>>, vector<1x128xf32>,
    return
  }
  func.func @transform_0(%arg0: i32) -> (i32, i32) {
    %c0_i32 = arith.constant 0 : i32
    %c0_i32_0 = arith.constant 0 : i32
    %c0_i32_1 = arith.constant 0 : i32
    return %c0_i32, %c0_i32_0 : i32, i32
  }
  func.func @transform_1(%arg0: i32) -> (i32, i32) {
    %c0_i32 = arith.constant 0 : i32
    %c0_i32_0 = arith.constant 0 : i32
    %c0_i32_1 = arith.constant 0 : i32
    return %c0_i32, %c0_i32_0 : i32, i32
  }
  func.func @transform_2(%arg0: i32) -> (i32, i32) {
    %c0_i32 = arith.constant 0 : i32
    %c0_i32_0 = arith.constant 0 : i32
    %c0_i32_1 = arith.constant 0 : i32
    return %c0_i32, %c0_i32_0 : i32, i32
  }
  func.func @transform_3(%arg0: i32) -> (i32, i32) {
    %c0_i32 = arith.constant 0 : i32
    %c0_i32_0 = arith.constant 0 : i32
    %c0_i32_1 = arith.constant 0 : i32
    return %c0_i32, %c0_i32_0 : i32, i32
  }
  func.func @transform_4(%arg0: i32) -> (i32, i32) {
    %c0_i32 = arith.constant 0 : i32
    %c0_i32_0 = arith.constant 0 : i32
    %c0_i32_1 = arith.constant 0 : i32
    return %c0_i32, %c0_i32_0 : i32, i32
  }
  func.func @transform_5(%arg0: i32) -> (i32, i32) {
    %c0_i32 = arith.constant 0 : i32
    %c0_i32_0 = arith.constant 0 : i32
    %c0_i32_1 = arith.constant 0 : i32
    return %c0_i32, %c0_i32_0 : i32, i32
  }
  func.func @transform_6(%arg0: i32) -> (i32, i32) {
    %c0_i32 = arith.constant 0 : i32
    %c0_i32_0 = arith.constant 0 : i32
    return %c0_i32, %arg0 : i32, i32
  }
  func.func @transform_7(%arg0: i32) -> (i32, i32) {
    %c0_i32 = arith.constant 0 : i32
    %c0_i32_0 = arith.constant 0 : i32
    return %c0_i32, %arg0 : i32, i32
  }
}

</mosaic_0001>

<llo_original>
// kernel: filter_network.1
$region0: #{filter_network.1}
  #allocation0 [shape = 'u32[]', space=smem, size = 0x4, offset = 0x4, fixed_abs, tag = 'smem constant byte address 0x4 - core index']
  #allocation1 [shape = 'u32[144,128]{1,0:T(1,128)}', space=vmem, size = 0x12000, scoped, tag = 'internal scratch']
  #allocation2 [shape = 'f32[1,1]{1,0:T(1,128)S(1)}', space=vmem, size = 0x200, scoped, tag = 'scoped memory for filter_network.1']
  %s0 = inlined_call_operand.vmem [shape: f32[16,7], index: 0, kind: input, shape index: {}]
  %s1 = inlined_call_operand.vmem [shape: f32[16,1], index: 1, kind: input, shape index: {}]
  %s2 = inlined_call_operand.vmem [shape: f32[8,16], index: 2, kind: input, shape index: {}]
  %s3 = inlined_call_operand.vmem [shape: f32[8,1], index: 3, kind: input, shape index: {}]
  %s4 = inlined_call_operand.vmem [shape: f32[1,8], index: 4, kind: input, shape index: {}]
  %s5 = inlined_call_operand.<no memory space> [shape: f32[1,1], index: 5, kind: input, shape index: {}]
  %s6 = inlined_call_operand.vmem [shape: f32[7,128], index: 6, kind: input, shape index: {}]
  %s7 = inlined_call_operand.vmem [shape: f32[1,128], index: 7, kind: output, shape index: {}]
  %s8 = sld [smem:[#allocation0]]
  $region38: #{filter_network.1} parent=0
    _
  %s10 = ssub.s32 1, %s8
  %s11 = scalar_select 0, %s10, %s8
  %v12 = vstv %s5
  %13 = vst [vmem:[#allocation2] sm:$0x1] %v12
  // Predicated region
  $region2: #{filter_network.1} parent=0 // pred_check
    _
  $region3: #{filter_network.1} parent=0 // pred_check_branch
    %15 = sbr.rel (0) target = $region5
  $region4: #{filter_network.1} parent=0 // pred_region
    _
  $region5: #{filter_network.1} parent=0 // pred_fallthru
    _
  // Predicated region
  $region6: #{filter_network.1} parent=0 // pred_check
    _
  $region7: #{filter_network.1} parent=0 // pred_check_branch
    %17 = sbr.rel (0) target = $region9
  $region8: #{filter_network.1} parent=0 // pred_region
    _
  $region9: #{filter_network.1} parent=0 // pred_fallthru
    _
  // Predicated region
  $region10: #{filter_network.1} parent=0 // pred_check
    _
  $region11: #{filter_network.1} parent=0 // pred_check_branch
    %19 = sbr.rel (0) target = $region13
  $region12: #{filter_network.1} parent=0 // pred_region
    _
  $region13: #{filter_network.1} parent=0 // pred_fallthru
    _
  // Predicated region
  $region14: #{filter_network.1} parent=0 // pred_check
    _
  $region15: #{filter_network.1} parent=0 // pred_check_branch
    %21 = sbr.rel (0) target = $region17
  $region16: #{filter_network.1} parent=0 // pred_region
    _
  $region17: #{filter_network.1} parent=0 // pred_fallthru
    _
  // Predicated region
  $region18: #{filter_network.1} parent=0 // pred_check
    _
  $region19: #{filter_network.1} parent=0 // pred_check_branch
    %23 = sbr.rel (0) target = $region21
  $region20: #{filter_network.1} parent=0 // pred_region
    _
  $region21: #{filter_network.1} parent=0 // pred_fallthru
    _
  // Predicated region
  $region22: #{filter_network.1} parent=0 // pred_check
    _
  $region23: #{filter_network.1} parent=0 // pred_check_branch
    %25 = sbr.rel (0) target = $region25
  $region24: #{filter_network.1} parent=0 // pred_region
    _
  $region25: #{filter_network.1} parent=0 // pred_fallthru
    _
  // Predicated region
  $region26: #{filter_network.1} parent=0 // pred_check
    _
  $region27: #{filter_network.1} parent=0 // pred_check_branch
    %27 = sbr.rel (0) target = $region29
  $region28: #{filter_network.1} parent=0 // pred_region
    _
  $region29: #{filter_network.1} parent=0 // pred_fallthru
    _
  %v28 = vld [vmem:[%s6] sm:$0x7f]
  %v29 = vld [vmem:[%s0] sm:$0xff]
  %v30 = vld [vmem:[%s0 + $0x8] sm:$0xff]
  %v31 = vld [vmem:[%s1] sm:$0xff]
  %v32 = vld [vmem:[%s1 + $0x8] sm:$0xff]
  %34 = vset.pattern.permute.xlu0 0
  %35 = vperm.xlu0 %34, %v31
  %v36 = vpop.permute.xlu0 %35
  %39 = vset.pattern.permute.xlu0 0
  %40 = vperm.xlu0 %39, %v32
  %v41 = vpop.permute.xlu0 %40
  %vm43 = vcmask 56320
  %v45 = vsel %vm43, %v29, 0
  %v48 = vsel %vm43, %v30, 0
  %vm50 = vcmask 1046528
  %v52 = vsel %vm50, %v28, 0
  %54 = vmatprep.subr.mxu0 0.0
  %v55 = vand.u32 %v52, 4294901760
  %56 = vmatpush1.msra.mxu0 %v55
  %57 = vmatprep.subr.mxu0 0.0
  %58 = vmatpush1.msra.mxu0 0.0
  %59 = vmatprep.subr.mxu0 0.0
  %60 = vmatpush1.msra.mxu0 0.0
  %61 = vmatprep.subr.mxu0 0.0
  %62 = vmatpush1.msra.mxu0 0.0
  %63 = vmatprep.subr.mxu0 0.0
  %64 = vmatpush1.msra.mxu0 0.0
  %65 = vmatprep.subr.mxu0 0.0
  %66 = vmatpush1.msra.mxu0 0.0
  %67 = vmatprep.subr.mxu0 0.0
  %68 = vmatpush1.msra.mxu0 0.0
  %69 = vmatprep.subr.mxu0 0.0
  %70 = vmatpush1.msra.mxu0 0.0
  %71 = vmatprep.subr.mxu0 0.0
  %72 = vmatpush1.msra.mxu0 0.0
  %73 = vmatprep.subr.mxu0 0.0
  %74 = vmatpush1.msra.mxu0 0.0
  %75 = vmatprep.subr.mxu0 0.0
  %76 = vmatpush1.msra.mxu0 0.0
  %77 = vmatprep.subr.mxu0 0.0
  %78 = vmatpush1.msra.mxu0 0.0
  %79 = vmatprep.subr.mxu0 0.0
  %80 = vmatpush1.msra.mxu0 0.0
  %81 = vmatprep.subr.mxu0 0.0
  %82 = vmatpush1.msra.mxu0 0.0
  %83 = vmatprep.subr.mxu0 0.0
  %84 = vmatpush1.msra.mxu0 0.0
  %85 = vmatprep.subr.mxu0 0.0
  %86 = vmatpush1.msra.mxu0 0.0
  %87 = vmatprep.subr.mxu0 0.0
  %88 = vmatpush1.msra.mxu0 0.0
  %89 = vmatprep.subr.mxu0 0.0
  %90 = vmatpush1.msra.mxu0 0.0
  %91 = vmatprep.subr.mxu0 0.0
  %92 = vmatpush1.msra.mxu0 0.0
  %93 = vmatprep.subr.mxu0 0.0
  %94 = vmatpush1.msra.mxu0 0.0
  %95 = vmatprep.subr.mxu0 0.0
  %96 = vmatpush1.msra.mxu0 0.0
  %97 = vmatprep.subr.mxu0 0.0
  %98 = vmatpush1.msra.mxu0 0.0
  %99 = vmatprep.subr.mxu0 0.0
  %100 = vmatpush1.msra.mxu0 0.0
  %101 = vmatprep.subr.mxu0 0.0
  %102 = vmatpush1.msra.mxu0 0.0
  %103 = vmatprep.subr.mxu0 0.0
  %104 = vmatpush1.msra.mxu0 0.0
  %105 = vmatprep.subr.mxu0 0.0
  %106 = vmatpush1.msra.mxu0 0.0
  %107 = vmatprep.subr.mxu0 0.0
  %108 = vmatpush1.msra.mxu0 0.0
  %109 = vmatprep.subr.mxu0 0.0
  %110 = vmatpush1.msra.mxu0 0.0
  %111 = vmatprep.subr.mxu0 0.0
  %112 = vmatpush1.msra.mxu0 0.0
  %113 = vmatprep.subr.mxu0 0.0
  %114 = vmatpush1.msra.mxu0 0.0
  %115 = vmatprep.subr.mxu0 0.0
  %116 = vmatpush1.msra.mxu0 0.0
  %117 = vmatprep.subr.mxu0 0.0
  %118 = vmatpush1.msra.mxu0 0.0
  %119 = vmatprep.mubr.f32.mxu0 0.0
  %v120 = vand.u32 %v45, 4294901760
  %v121 = vsub.f32 %v45, %v120
  %v122 = vand.u32 %v121, 4294901760
  %v123 = vsub.f32 %v121, %v122
  %v124 = vand.u32 %v123, 4294901760
  %125 = vmatmul.mubr.f32.gmra.mrb[0].mxu0 %v124
  %v126 = vpop.f32.mrb[0].mxu0
  %v127 = vadd.f32 %v36, %v126
  %v128 = vpop.f32.mrb[0].mxu0
  %129 = vmatprep.mubr.f32.mxu0 0.0
  %v130 = vand.u32 %v48, 4294901760
  %v131 = vsub.f32 %v48, %v130
  %v132 = vand.u32 %v131, 4294901760
  %v133 = vsub.f32 %v131, %v132
  %v134 = vand.u32 %v133, 4294901760
  %135 = vmatmul.mubr.f32.gmra.mrb[0].mxu0 %v134
  %v136 = vpop.f32.mrb[0].mxu0
  %v137 = vadd.f32 %v41, %v136
  %v138 = vpop.f32.mrb[0].mxu0
  %139 = vdwg.mxu0
  %140 = vmatprep.subr.mxu0 0.0
  %v141 = vand.u32 %v52, 4294901760
  %v142 = vsub.f32 %v52, %v141
  %v143 = vand.u32 %v142, 4294901760
  %v144 = vsub.f32 %v142, %v143
  %v145 = vand.u32 %v144, 4294901760
  %146 = vmatpush1.msra.mxu0 %v145
  %147 = vmatprep.subr.mxu0 0.0
  %148 = vmatpush1.msra.mxu0 0.0
  %149 = vmatprep.subr.mxu0 0.0
  %150 = vmatpush1.msra.mxu0 0.0
  %151 = vmatprep.subr.mxu0 0.0
  %152 = vmatpush1.msra.mxu0 0.0
  %153 = vmatprep.subr.mxu0 0.0
  %154 = vmatpush1.msra.mxu0 0.0
  %155 = vmatprep.subr.mxu0 0.0
  %156 = vmatpush1.msra.mxu0 0.0
  %157 = vmatprep.subr.mxu0 0.0
  %158 = vmatpush1.msra.mxu0 0.0
  %159 = vmatprep.subr.mxu0 0.0
  %160 = vmatpush1.msra.mxu0 0.0
  %161 = vmatprep.subr.mxu0 0.0
  %162 = vmatpush1.msra.mxu0 0.0
  %163 = vmatprep.subr.mxu0 0.0
  %164 = vmatpush1.msra.mxu0 0.0
  %165 = vmatprep.subr.mxu0 0.0
  %166 = vmatpush1.msra.mxu0 0.0
  %167 = vmatprep.subr.mxu0 0.0
  %168 = vmatpush1.msra.mxu0 0.0
  %169 = vmatprep.subr.mxu0 0.0
  %170 = vmatpush1.msra.mxu0 0.0
  %171 = vmatprep.subr.mxu0 0.0
  %172 = vmatpush1.msra.mxu0 0.0
  %173 = vmatprep.subr.mxu0 0.0
  %174 = vmatpush1.msra.mxu0 0.0
  %175 = vmatprep.subr.mxu0 0.0
  %176 = vmatpush1.msra.mxu0 0.0
  %177 = vmatprep.subr.mxu0 0.0
  %178 = vmatpush1.msra.mxu0 0.0
  %179 = vmatprep.subr.mxu0 0.0
  %180 = vmatpush1.msra.mxu0 0.0
  %181 = vmatprep.subr.mxu0 0.0
  %182 = vmatpush1.msra.mxu0 0.0
  %183 = vmatprep.subr.mxu0 0.0
  %184 = vmatpush1.msra.mxu0 0.0
  %185 = vmatprep.subr.mxu0 0.0
  %186 = vmatpush1.msra.mxu0 0.0
  %187 = vmatprep.subr.mxu0 0.0
  %188 = vmatpush1.msra.mxu0 0.0
  %189 = vmatprep.subr.mxu0 0.0
  %190 = vmatpush1.msra.mxu0 0.0
  %191 = vmatprep.subr.mxu0 0.0
  %192 = vmatpush1.msra.mxu0 0.0
  %193 = vmatprep.subr.mxu0 0.0
  %194 = vmatpush1.msra.mxu0 0.0
  %195 = vmatprep.subr.mxu0 0.0
  %196 = vmatpush1.msra.mxu0 0.0
  %197 = vmatprep.subr.mxu0 0.0
  %198 = vmatpush1.msra.mxu0 0.0
  %199 = vmatprep.subr.mxu0 0.0
  %200 = vmatpush1.msra.mxu0 0.0
  %201 = vmatprep.subr.mxu0 0.0
  %202 = vmatpush1.msra.mxu0 0.0
  %203 = vmatprep.subr.mxu0 0.0
  %204 = vmatpush1.msra.mxu0 0.0
  %205 = vmatprep.subr.mxu0 0.0
  %206 = vmatpush1.msra.mxu0 0.0
  %207 = vmatprep.subr.mxu0 0.0
  %208 = vmatpush1.msra.mxu0 0.0
  %209 = vmatprep.mubr.f32.mxu0 0.0
  %v210 = vand.u32 %v45, 4294901760
  %211 = vmatmul.mubr.f32.gmra.mrb[0].mxu0 %v210
  %v212 = vpop.f32.mrb[0].mxu0
  %v213 = vadd.f32 %v127, %v212
  %v214 = vpop.f32.mrb[0].mxu0
  %215 = vmatprep.mubr.f32.mxu0 0.0
  %v216 = vand.u32 %v48, 4294901760
  %217 = vmatmul.mubr.f32.gmra.mrb[0].mxu0 %v216
  %v218 = vpop.f32.mrb[0].mxu0
  %v219 = vadd.f32 %v137, %v218
  %v220 = vpop.f32.mrb[0].mxu0
  %221 = vdwg.mxu0
  %222 = vmatprep.subr.mxu0 0.0
  %v223 = vand.u32 %v52, 4294901760
  %v224 = vsub.f32 %v52, %v223
  %225 = vmatpush1.msra.mxu0 %v224
  %226 = vmatprep.subr.mxu0 0.0
  %227 = vmatpush1.msra.mxu0 0.0
  %228 = vmatprep.subr.mxu0 0.0
  %229 = vmatpush1.msra.mxu0 0.0
  %230 = vmatprep.subr.mxu0 0.0
  %231 = vmatpush1.msra.mxu0 0.0
  %232 = vmatprep.subr.mxu0 0.0
  %233 = vmatpush1.msra.mxu0 0.0
  %234 = vmatprep.subr.mxu0 0.0
  %235 = vmatpush1.msra.mxu0 0.0
  %236 = vmatprep.subr.mxu0 0.0
  %237 = vmatpush1.msra.mxu0 0.0
  %238 = vmatprep.subr.mxu0 0.0
  %239 = vmatpush1.msra.mxu0 0.0
  %240 = vmatprep.subr.mxu0 0.0
  %241 = vmatpush1.msra.mxu0 0.0
  %242 = vmatprep.subr.mxu0 0.0
  %243 = vmatpush1.msra.mxu0 0.0
  %244 = vmatprep.subr.mxu0 0.0
  %245 = vmatpush1.msra.mxu0 0.0
  %246 = vmatprep.subr.mxu0 0.0
  %247 = vmatpush1.msra.mxu0 0.0
  %248 = vmatprep.subr.mxu0 0.0
  %249 = vmatpush1.msra.mxu0 0.0
  %250 = vmatprep.subr.mxu0 0.0
  %251 = vmatpush1.msra.mxu0 0.0
  %252 = vmatprep.subr.mxu0 0.0
  %253 = vmatpush1.msra.mxu0 0.0
  %254 = vmatprep.subr.mxu0 0.0
  %255 = vmatpush1.msra.mxu0 0.0
  %256 = vmatprep.subr.mxu0 0.0
  %257 = vmatpush1.msra.mxu0 0.0
  %258 = vmatprep.subr.mxu0 0.0
  %259 = vmatpush1.msra.mxu0 0.0
  %260 = vmatprep.subr.mxu0 0.0
  %261 = vmatpush1.msra.mxu0 0.0
  %262 = vmatprep.subr.mxu0 0.0
  %263 = vmatpush1.msra.mxu0 0.0
  %264 = vmatprep.subr.mxu0 0.0
  %265 = vmatpush1.msra.mxu0 0.0
  %266 = vmatprep.subr.mxu0 0.0
  %267 = vmatpush1.msra.mxu0 0.0
  %268 = vmatprep.subr.mxu0 0.0
  %269 = vmatpush1.msra.mxu0 0.0
  %270 = vmatprep.subr.mxu0 0.0
  %271 = vmatpush1.msra.mxu0 0.0
  %272 = vmatprep.subr.mxu0 0.0
  %273 = vmatpush1.msra.mxu0 0.0
  %274 = vmatprep.subr.mxu0 0.0
  %275 = vmatpush1.msra.mxu0 0.0
  %276 = vmatprep.subr.mxu0 0.0
  %277 = vmatpush1.msra.mxu0 0.0
  %278 = vmatprep.subr.mxu0 0.0
  %279 = vmatpush1.msra.mxu0 0.0
  %280 = vmatprep.subr.mxu0 0.0
  %281 = vmatpush1.msra.mxu0 0.0
  %282 = vmatprep.subr.mxu0 0.0
  %283 = vmatpush1.msra.mxu0 0.0
  %284 = vmatprep.subr.mxu0 0.0
  %285 = vmatpush1.msra.mxu0 0.0
  %286 = vmatprep.subr.mxu0 0.0
  %287 = vmatpush1.msra.mxu0 0.0
  %288 = vmatprep.mubr.f32.mxu0 0.0
  %v289 = vand.u32 %v45, 4294901760
  %v290 = vsub.f32 %v45, %v289
  %291 = vmatmul.mubr.f32.gmra.mrb[0].mxu0 %v290
  %v292 = vpop.f32.mrb[0].mxu0
  %v293 = vadd.f32 %v213, %v292
  %v294 = vpop.f32.mrb[0].mxu0
  %295 = vmatprep.mubr.f32.mxu0 0.0
  %v296 = vand.u32 %v48, 4294901760
  %v297 = vsub.f32 %v48, %v296
  %298 = vmatmul.mubr.f32.gmra.mrb[0].mxu0 %v297
  %v299 = vpop.f32.mrb[0].mxu0
  %v300 = vadd.f32 %v219, %v299
  %v301 = vpop.f32.mrb[0].mxu0
  %302 = vdwg.mxu0
  %303 = vmatprep.subr.mxu0 0.0
  %v304 = vand.u32 %v52, 4294901760
  %305 = vmatpush1.msra.mxu0 %v304
  %306 = vmatprep.subr.mxu0 0.0
  %307 = vmatpush1.msra.mxu0 0.0
  %308 = vmatprep.subr.mxu0 0.0
  %309 = vmatpush1.msra.mxu0 0.0
  %310 = vmatprep.subr.mxu0 0.0
  %311 = vmatpush1.msra.mxu0 0.0
  %312 = vmatprep.subr.mxu0 0.0
  %313 = vmatpush1.msra.mxu0 0.0
  %314 = vmatprep.subr.mxu0 0.0
  %315 = vmatpush1.msra.mxu0 0.0
  %316 = vmatprep.subr.mxu0 0.0
  %317 = vmatpush1.msra.mxu0 0.0
  %318 = vmatprep.subr.mxu0 0.0
  %319 = vmatpush1.msra.mxu0 0.0
  %320 = vmatprep.subr.mxu0 0.0
  %321 = vmatpush1.msra.mxu0 0.0
  %322 = vmatprep.subr.mxu0 0.0
  %323 = vmatpush1.msra.mxu0 0.0
  %324 = vmatprep.subr.mxu0 0.0
  %325 = vmatpush1.msra.mxu0 0.0
  %326 = vmatprep.subr.mxu0 0.0
  %327 = vmatpush1.msra.mxu0 0.0
  %328 = vmatprep.subr.mxu0 0.0
  %329 = vmatpush1.msra.mxu0 0.0
  %330 = vmatprep.subr.mxu0 0.0
  %331 = vmatpush1.msra.mxu0 0.0
  %332 = vmatprep.subr.mxu0 0.0
  %333 = vmatpush1.msra.mxu0 0.0
  %334 = vmatprep.subr.mxu0 0.0
  %335 = vmatpush1.msra.mxu0 0.0
  %336 = vmatprep.subr.mxu0 0.0
  %337 = vmatpush1.msra.mxu0 0.0
  %338 = vmatprep.subr.mxu0 0.0
  %339 = vmatpush1.msra.mxu0 0.0
  %340 = vmatprep.subr.mxu0 0.0
  %341 = vmatpush1.msra.mxu0 0.0
  %342 = vmatprep.subr.mxu0 0.0
  %343 = vmatpush1.msra.mxu0 0.0
  %344 = vmatprep.subr.mxu0 0.0
  %345 = vmatpush1.msra.mxu0 0.0
  %346 = vmatprep.subr.mxu0 0.0
  %347 = vmatpush1.msra.mxu0 0.0
  %348 = vmatprep.subr.mxu0 0.0
  %349 = vmatpush1.msra.mxu0 0.0
  %350 = vmatprep.subr.mxu0 0.0
  %351 = vmatpush1.msra.mxu0 0.0
  %352 = vmatprep.subr.mxu0 0.0
  %353 = vmatpush1.msra.mxu0 0.0
  %354 = vmatprep.subr.mxu0 0.0
  %355 = vmatpush1.msra.mxu0 0.0
  %356 = vmatprep.subr.mxu0 0.0
  %357 = vmatpush1.msra.mxu0 0.0
  %358 = vmatprep.subr.mxu0 0.0
  %359 = vmatpush1.msra.mxu0 0.0
  %360 = vmatprep.subr.mxu0 0.0
  %361 = vmatpush1.msra.mxu0 0.0
  %362 = vmatprep.subr.mxu0 0.0
  %363 = vmatpush1.msra.mxu0 0.0
  %364 = vmatprep.subr.mxu0 0.0
  %365 = vmatpush1.msra.mxu0 0.0
  %366 = vmatprep.subr.mxu0 0.0
  %367 = vmatpush1.msra.mxu0 0.0
  %368 = vmatprep.mubr.f32.mxu0 0.0
  %v369 = vand.u32 %v45, 4294901760
  %v370 = vsub.f32 %v45, %v369
  %v371 = vand.u32 %v370, 4294901760
  %372 = vmatmul.mubr.f32.gmra.mrb[0].mxu0 %v371
  %v373 = vpop.f32.mrb[0].mxu0
  %v374 = vadd.f32 %v293, %v373
  %v375 = vpop.f32.mrb[0].mxu0
  %376 = vmatprep.mubr.f32.mxu0 0.0
  %v377 = vand.u32 %v48, 4294901760
  %v378 = vsub.f32 %v48, %v377
  %v379 = vand.u32 %v378, 4294901760
  %380 = vmatmul.mubr.f32.gmra.mrb[0].mxu0 %v379
  %v381 = vpop.f32.mrb[0].mxu0
  %v382 = vadd.f32 %v300, %v381
  %v383 = vpop.f32.mrb[0].mxu0
  %384 = vdwg.mxu0
  %385 = vmatprep.subr.mxu0 0.0
  %v386 = vand.u32 %v52, 4294901760
  %v387 = vsub.f32 %v52, %v386
  %v388 = vand.u32 %v387, 4294901760
  %389 = vmatpush1.msra.mxu0 %v388
  %390 = vmatprep.subr.mxu0 0.0
  %391 = vmatpush1.msra.mxu0 0.0
  %392 = vmatprep.subr.mxu0 0.0
  %393 = vmatpush1.msra.mxu0 0.0
  %394 = vmatprep.subr.mxu0 0.0
  %395 = vmatpush1.msra.mxu0 0.0
  %396 = vmatprep.subr.mxu0 0.0
  %397 = vmatpush1.msra.mxu0 0.0
  %398 = vmatprep.subr.mxu0 0.0
  %399 = vmatpush1.msra.mxu0 0.0
  %400 = vmatprep.subr.mxu0 0.0
  %401 = vmatpush1.msra.mxu0 0.0
  %402 = vmatprep.subr.mxu0 0.0
  %403 = vmatpush1.msra.mxu0 0.0
  %404 = vmatprep.subr.mxu0 0.0
  %405 = vmatpush1.msra.mxu0 0.0
  %406 = vmatprep.subr.mxu0 0.0
  %407 = vmatpush1.msra.mxu0 0.0
  %408 = vmatprep.subr.mxu0 0.0
  %409 = vmatpush1.msra.mxu0 0.0
  %410 = vmatprep.subr.mxu0 0.0
  %411 = vmatpush1.msra.mxu0 0.0
  %412 = vmatprep.subr.mxu0 0.0
  %413 = vmatpush1.msra.mxu0 0.0
  %414 = vmatprep.subr.mxu0 0.0
  %415 = vmatpush1.msra.mxu0 0.0
  %416 = vmatprep.subr.mxu0 0.0
  %417 = vmatpush1.msra.mxu0 0.0
  %418 = vmatprep.subr.mxu0 0.0
  %419 = vmatpush1.msra.mxu0 0.0
  %420 = vmatprep.subr.mxu0 0.0
  %421 = vmatpush1.msra.mxu0 0.0
  %422 = vmatprep.subr.mxu0 0.0
  %423 = vmatpush1.msra.mxu0 0.0
  %424 = vmatprep.subr.mxu0 0.0
  %425 = vmatpush1.msra.mxu0 0.0
  %426 = vmatprep.subr.mxu0 0.0
  %427 = vmatpush1.msra.mxu0 0.0
  %428 = vmatprep.subr.mxu0 0.0
  %429 = vmatpush1.msra.mxu0 0.0
  %430 = vmatprep.subr.mxu0 0.0
  %431 = vmatpush1.msra.mxu0 0.0
  %432 = vmatprep.subr.mxu0 0.0
  %433 = vmatpush1.msra.mxu0 0.0
  %434 = vmatprep.subr.mxu0 0.0
  %435 = vmatpush1.msra.mxu0 0.0
  %436 = vmatprep.subr.mxu0 0.0
  %437 = vmatpush1.msra.mxu0 0.0
  %438 = vmatprep.subr.mxu0 0.0
  %439 = vmatpush1.msra.mxu0 0.0
  %440 = vmatprep.subr.mxu0 0.0
  %441 = vmatpush1.msra.mxu0 0.0
  %442 = vmatprep.subr.mxu0 0.0
  %443 = vmatpush1.msra.mxu0 0.0
  %444 = vmatprep.subr.mxu0 0.0
  %445 = vmatpush1.msra.mxu0 0.0
  %446 = vmatprep.subr.mxu0 0.0
  %447 = vmatpush1.msra.mxu0 0.0
  %448 = vmatprep.subr.mxu0 0.0
  %449 = vmatpush1.msra.mxu0 0.0
  %450 = vmatprep.subr.mxu0 0.0
  %451 = vmatpush1.msra.mxu0 0.0
  %452 = vmatprep.mubr.f32.mxu0 0.0
  %v453 = vand.u32 %v45, 4294901760
  %454 = vmatmul.mubr.f32.gmra.mrb[0].mxu0 %v453
  %v455 = vpop.f32.mrb[0].mxu0
  %v456 = vadd.f32 %v374, %v455
  %v457 = vpop.f32.mrb[0].mxu0
  %458 = vmatprep.mubr.f32.mxu0 0.0
  %v459 = vand.u32 %v48, 4294901760
  %460 = vmatmul.mubr.f32.gmra.mrb[0].mxu0 %v459
  %v461 = vpop.f32.mrb[0].mxu0
  %v462 = vadd.f32 %v382, %v461
  %v463 = vpop.f32.mrb[0].mxu0
  %464 = vdwg.mxu0
  %465 = vmatprep.subr.mxu0 0.0
  %v466 = vand.u32 %v52, 4294901760
  %467 = vmatpush1.msra.mxu0 %v466
  %468 = vmatprep.subr.mxu0 0.0
  %469 = vmatpush1.msra.mxu0 0.0
  %470 = vmatprep.subr.mxu0 0.0
  %471 = vmatpush1.msra.mxu0 0.0
  %472 = vmatprep.subr.mxu0 0.0
  %473 = vmatpush1.msra.mxu0 0.0
  %474 = vmatprep.subr.mxu0 0.0
  %475 = vmatpush1.msra.mxu0 0.0
  %476 = vmatprep.subr.mxu0 0.0
  %477 = vmatpush1.msra.mxu0 0.0
  %478 = vmatprep.subr.mxu0 0.0
  %479 = vmatpush1.msra.mxu0 0.0
  %480 = vmatprep.subr.mxu0 0.0
  %481 = vmatpush1.msra.mxu0 0.0
  %482 = vmatprep.subr.mxu0 0.0
  %483 = vmatpush1.msra.mxu0 0.0
  %484 = vmatprep.subr.mxu0 0.0
  %485 = vmatpush1.msra.mxu0 0.0
  %486 = vmatprep.subr.mxu0 0.0
  %487 = vmatpush1.msra.mxu0 0.0
  %488 = vmatprep.subr.mxu0 0.0
  %489 = vmatpush1.msra.mxu0 0.0
  %490 = vmatprep.subr.mxu0 0.0
  %491 = vmatpush1.msra.mxu0 0.0
  %492 = vmatprep.subr.mxu0 0.0
  %493 = vmatpush1.msra.mxu0 0.0
  %494 = vmatprep.subr.mxu0 0.0
  %495 = vmatpush1.msra.mxu0 0.0
  %496 = vmatprep.subr.mxu0 0.0
  %497 = vmatpush1.msra.mxu0 0.0
  %498 = vmatprep.subr.mxu0 0.0
  %499 = vmatpush1.msra.mxu0 0.0
  %500 = vmatprep.subr.mxu0 0.0
  %501 = vmatpush1.msra.mxu0 0.0
  %502 = vmatprep.subr.mxu0 0.0
  %503 = vmatpush1.msra.mxu0 0.0
  %504 = vmatprep.subr.mxu0 0.0
  %505 = vmatpush1.msra.mxu0 0.0
  %506 = vmatprep.subr.mxu0 0.0
  %507 = vmatpush1.msra.mxu0 0.0
  %508 = vmatprep.subr.mxu0 0.0
  %509 = vmatpush1.msra.mxu0 0.0
  %510 = vmatprep.subr.mxu0 0.0
  %511 = vmatpush1.msra.mxu0 0.0
  %512 = vmatprep.subr.mxu0 0.0
  %513 = vmatpush1.msra.mxu0 0.0
  %514 = vmatprep.subr.mxu0 0.0
  %515 = vmatpush1.msra.mxu0 0.0
  %516 = vmatprep.subr.mxu0 0.0
  %517 = vmatpush1.msra.mxu0 0.0
  %518 = vmatprep.subr.mxu0 0.0
  %519 = vmatpush1.msra.mxu0 0.0
  %520 = vmatprep.subr.mxu0 0.0
  %521 = vmatpush1.msra.mxu0 0.0
  %522 = vmatprep.subr.mxu0 0.0
  %523 = vmatpush1.msra.mxu0 0.0
  %524 = vmatprep.subr.mxu0 0.0
  %525 = vmatpush1.msra.mxu0 0.0
  %526 = vmatprep.subr.mxu0 0.0
  %527 = vmatpush1.msra.mxu0 0.0
  %528 = vmatprep.subr.mxu0 0.0
  %529 = vmatpush1.msra.mxu0 0.0
  %530 = vmatprep.mubr.f32.mxu0 0.0
  %v531 = vand.u32 %v45, 4294901760
  %532 = vmatmul.mubr.f32.gmra.mrb[0].mxu0 %v531
  %v533 = vpop.f32.mrb[0].mxu0
  %v534 = vadd.f32 %v456, %v533
  %v535 = vpop.f32.mrb[0].mxu0
  %536 = vmatprep.mubr.f32.mxu0 0.0
  %v537 = vand.u32 %v48, 4294901760
  %538 = vmatmul.mubr.f32.gmra.mrb[0].mxu0 %v537
  %v539 = vpop.f32.mrb[0].mxu0
  %v540 = vadd.f32 %v462, %v539
  %v541 = vpop.f32.mrb[0].mxu0
  %542 = vdwg.mxu0
  %v543 = vtanh.pop %v534
  %v544 = vtanh.pop %v540
  %v545 = vld [vmem:[%s2] sm:$0xff]
  %v546 = vld [vmem:[%s3] sm:$0xff]
  %548 = vset.pattern.permute.xlu0 0
  %549 = vperm.xlu0 %548, %v546
  %v550 = vpop.permute.xlu0 %549
  %vm552 = vcmask 130048
  %v554 = vsel %vm552, %v545, 0
  %556 = vmatprep.subr.mxu0 0.0
  %v557 = vand.u32 %v543, 4294901760
  %558 = vmatpush1.msra.mxu0 %v557
  %559 = vmatprep.subr.mxu0 0.0
  %v560 = vand.u32 %v544, 4294901760
  %561 = vmatpush1.msra.mxu0 %v560
  %562 = vmatprep.subr.mxu0 0.0
  %563 = vmatpush1.msra.mxu0 0.0
  %564 = vmatprep.subr.mxu0 0.0
  %565 = vmatpush1.msra.mxu0 0.0
  %566 = vmatprep.subr.mxu0 0.0
  %567 = vmatpush1.msra.mxu0 0.0
  %568 = vmatprep.subr.mxu0 0.0
  %569 = vmatpush1.msra.mxu0 0.0
  %570 = vmatprep.subr.mxu0 0.0
  %571 = vmatpush1.msra.mxu0 0.0
  %572 = vmatprep.subr.mxu0 0.0
  %573 = vmatpush1.msra.mxu0 0.0
  %574 = vmatprep.subr.mxu0 0.0
  %575 = vmatpush1.msra.mxu0 0.0
  %576 = vmatprep.subr.mxu0 0.0
  %577 = vmatpush1.msra.mxu0 0.0
  %578 = vmatprep.subr.mxu0 0.0
  %579 = vmatpush1.msra.mxu0 0.0
  %580 = vmatprep.subr.mxu0 0.0
  %581 = vmatpush1.msra.mxu0 0.0
  %582 = vmatprep.subr.mxu0 0.0
  %583 = vmatpush1.msra.mxu0 0.0
  %584 = vmatprep.subr.mxu0 0.0
  %585 = vmatpush1.msra.mxu0 0.0
  %586 = vmatprep.subr.mxu0 0.0
  %587 = vmatpush1.msra.mxu0 0.0
  %588 = vmatprep.subr.mxu0 0.0
  %589 = vmatpush1.msra.mxu0 0.0
  %590 = vmatprep.subr.mxu0 0.0
  %591 = vmatpush1.msra.mxu0 0.0
  %592 = vmatprep.subr.mxu0 0.0
  %593 = vmatpush1.msra.mxu0 0.0
  %594 = vmatprep.subr.mxu0 0.0
  %595 = vmatpush1.msra.mxu0 0.0
  %596 = vmatprep.subr.mxu0 0.0
  %597 = vmatpush1.msra.mxu0 0.0
  %598 = vmatprep.subr.mxu0 0.0
  %599 = vmatpush1.msra.mxu0 0.0
  %600 = vmatprep.subr.mxu0 0.0
  %601 = vmatpush1.msra.mxu0 0.0
  %602 = vmatprep.subr.mxu0 0.0
  %603 = vmatpush1.msra.mxu0 0.0
  %604 = vmatprep.subr.mxu0 0.0
  %605 = vmatpush1.msra.mxu0 0.0
  %606 = vmatprep.subr.mxu0 0.0
  %607 = vmatpush1.msra.mxu0 0.0
  %608 = vmatprep.subr.mxu0 0.0
  %609 = vmatpush1.msra.mxu0 0.0
  %610 = vmatprep.subr.mxu0 0.0
  %611 = vmatpush1.msra.mxu0 0.0
  %612 = vmatprep.subr.mxu0 0.0
  %613 = vmatpush1.msra.mxu0 0.0
  %614 = vmatprep.subr.mxu0 0.0
  %615 = vmatpush1.msra.mxu0 0.0
  %616 = vmatprep.subr.mxu0 0.0
  %617 = vmatpush1.msra.mxu0 0.0
  %618 = vmatprep.subr.mxu0 0.0
  %619 = vmatpush1.msra.mxu0 0.0
  %620 = vmatprep.subr.mxu0 0.0
  %621 = vmatpush1.msra.mxu0 0.0
  %622 = vmatprep.mubr.f32.mxu0 0.0
  %v623 = vand.u32 %v554, 4294901760
  %v624 = vsub.f32 %v554, %v623
  %v625 = vand.u32 %v624, 4294901760
  %v626 = vsub.f32 %v624, %v625
  %v627 = vand.u32 %v626, 4294901760
  %628 = vmatmul.mubr.f32.gmra.mrb[0].mxu0 %v627
  %v629 = vpop.f32.mrb[0].mxu0
  %v630 = vadd.f32 %v550, %v629
  %v631 = vpop.f32.mrb[0].mxu0
  %632 = vdwg.mxu0
  %633 = vmatprep.subr.mxu0 0.0
  %v634 = vand.u32 %v543, 4294901760
  %v635 = vsub.f32 %v543, %v634
  %v636 = vand.u32 %v635, 4294901760
  %v637 = vsub.f32 %v635, %v636
  %v638 = vand.u32 %v637, 4294901760
  %639 = vmatpush1.msra.mxu0 %v638
  %640 = vmatprep.subr.mxu0 0.0
  %v641 = vand.u32 %v544, 4294901760
  %v642 = vsub.f32 %v544, %v641
  %v643 = vand.u32 %v642, 4294901760
  %v644 = vsub.f32 %v642, %v643
  %v645 = vand.u32 %v644, 4294901760
  %646 = vmatpush1.msra.mxu0 %v645
  %647 = vmatprep.subr.mxu0 0.0
  %648 = vmatpush1.msra.mxu0 0.0
  %649 = vmatprep.subr.mxu0 0.0
  %650 = vmatpush1.msra.mxu0 0.0
  %651 = vmatprep.subr.mxu0 0.0
  %652 = vmatpush1.msra.mxu0 0.0
  %653 = vmatprep.subr.mxu0 0.0
  %654 = vmatpush1.msra.mxu0 0.0
  %655 = vmatprep.subr.mxu0 0.0
  %656 = vmatpush1.msra.mxu0 0.0
  %657 = vmatprep.subr.mxu0 0.0
  %658 = vmatpush1.msra.mxu0 0.0
  %659 = vmatprep.subr.mxu0 0.0
  %660 = vmatpush1.msra.mxu0 0.0
  %661 = vmatprep.subr.mxu0 0.0
  %662 = vmatpush1.msra.mxu0 0.0
  %663 = vmatprep.subr.mxu0 0.0
  %664 = vmatpush1.msra.mxu0 0.0
  %665 = vmatprep.subr.mxu0 0.0
  %666 = vmatpush1.msra.mxu0 0.0
  %667 = vmatprep.subr.mxu0 0.0
  %668 = vmatpush1.msra.mxu0 0.0
  %669 = vmatprep.subr.mxu0 0.0
  %670 = vmatpush1.msra.mxu0 0.0
  %671 = vmatprep.subr.mxu0 0.0
  %672 = vmatpush1.msra.mxu0 0.0
  %673 = vmatprep.subr.mxu0 0.0
  %674 = vmatpush1.msra.mxu0 0.0
  %675 = vmatprep.subr.mxu0 0.0
  %676 = vmatpush1.msra.mxu0 0.0
  %677 = vmatprep.subr.mxu0 0.0
  %678 = vmatpush1.msra.mxu0 0.0
  %679 = vmatprep.subr.mxu0 0.0
  %680 = vmatpush1.msra.mxu0 0.0
  %681 = vmatprep.subr.mxu0 0.0
  %682 = vmatpush1.msra.mxu0 0.0
  %683 = vmatprep.subr.mxu0 0.0
  %684 = vmatpush1.msra.mxu0 0.0
  %685 = vmatprep.subr.mxu0 0.0
  %686 = vmatpush1.msra.mxu0 0.0
  %687 = vmatprep.subr.mxu0 0.0
  %688 = vmatpush1.msra.mxu0 0.0
  %689 = vmatprep.subr.mxu0 0.0
  %690 = vmatpush1.msra.mxu0 0.0
  %691 = vmatprep.subr.mxu0 0.0
  %692 = vmatpush1.msra.mxu0 0.0
  %693 = vmatprep.subr.mxu0 0.0
  %694 = vmatpush1.msra.mxu0 0.0
  %695 = vmatprep.subr.mxu0 0.0
  %696 = vmatpush1.msra.mxu0 0.0
  %697 = vmatprep.subr.mxu0 0.0
  %698 = vmatpush1.msra.mxu0 0.0
  %699 = vmatprep.subr.mxu0 0.0
  %700 = vmatpush1.msra.mxu0 0.0
  %701 = vmatprep.subr.mxu0 0.0
  %702 = vmatpush1.msra.mxu0 0.0
  %703 = vmatprep.subr.mxu0 0.0
  %704 = vmatpush1.msra.mxu0 0.0
  %705 = vmatprep.subr.mxu0 0.0
  %706 = vmatpush1.msra.mxu0 0.0
  %707 = vmatprep.mubr.f32.mxu0 0.0
  %v708 = vand.u32 %v554, 4294901760
  %709 = vmatmul.mubr.f32.gmra.mrb[0].mxu0 %v708
  %v710 = vpop.f32.mrb[0].mxu0
  %v711 = vadd.f32 %v630, %v710
  %v712 = vpop.f32.mrb[0].mxu0
  %713 = vdwg.mxu0
  %714 = vmatprep.subr.mxu0 0.0
  %v715 = vand.u32 %v543, 4294901760
  %v716 = vsub.f32 %v543, %v715
  %717 = vmatpush1.msra.mxu0 %v716
  %718 = vmatprep.subr.mxu0 0.0
  %v719 = vand.u32 %v544, 4294901760
  %v720 = vsub.f32 %v544, %v719
  %721 = vmatpush1.msra.mxu0 %v720
  %722 = vmatprep.subr.mxu0 0.0
  %723 = vmatpush1.msra.mxu0 0.0
  %724 = vmatprep.subr.mxu0 0.0
  %725 = vmatpush1.msra.mxu0 0.0
  %726 = vmatprep.subr.mxu0 0.0
  %727 = vmatpush1.msra.mxu0 0.0
  %728 = vmatprep.subr.mxu0 0.0
  %729 = vmatpush1.msra.mxu0 0.0
  %730 = vmatprep.subr.mxu0 0.0
  %731 = vmatpush1.msra.mxu0 0.0
  %732 = vmatprep.subr.mxu0 0.0
  %733 = vmatpush1.msra.mxu0 0.0
  %734 = vmatprep.subr.mxu0 0.0
  %735 = vmatpush1.msra.mxu0 0.0
  %736 = vmatprep.subr.mxu0 0.0
  %737 = vmatpush1.msra.mxu0 0.0
  %738 = vmatprep.subr.mxu0 0.0
  %739 = vmatpush1.msra.mxu0 0.0
  %740 = vmatprep.subr.mxu0 0.0
  %741 = vmatpush1.msra.mxu0 0.0
  %742 = vmatprep.subr.mxu0 0.0
  %743 = vmatpush1.msra.mxu0 0.0
  %744 = vmatprep.subr.mxu0 0.0
  %745 = vmatpush1.msra.mxu0 0.0
  %746 = vmatprep.subr.mxu0 0.0
  %747 = vmatpush1.msra.mxu0 0.0
  %748 = vmatprep.subr.mxu0 0.0
  %749 = vmatpush1.msra.mxu0 0.0
  %750 = vmatprep.subr.mxu0 0.0
  %751 = vmatpush1.msra.mxu0 0.0
  %752 = vmatprep.subr.mxu0 0.0
  %753 = vmatpush1.msra.mxu0 0.0
  %754 = vmatprep.subr.mxu0 0.0
  %755 = vmatpush1.msra.mxu0 0.0
  %756 = vmatprep.subr.mxu0 0.0
  %757 = vmatpush1.msra.mxu0 0.0
  %758 = vmatprep.subr.mxu0 0.0
  %759 = vmatpush1.msra.mxu0 0.0
  %760 = vmatprep.subr.mxu0 0.0
  %761 = vmatpush1.msra.mxu0 0.0
  %762 = vmatprep.subr.mxu0 0.0
  %763 = vmatpush1.msra.mxu0 0.0
  %764 = vmatprep.subr.mxu0 0.0
  %765 = vmatpush1.msra.mxu0 0.0
  %766 = vmatprep.subr.mxu0 0.0
  %767 = vmatpush1.msra.mxu0 0.0
  %768 = vmatprep.subr.mxu0 0.0
  %769 = vmatpush1.msra.mxu0 0.0
  %770 = vmatprep.subr.mxu0 0.0
  %771 = vmatpush1.msra.mxu0 0.0
  %772 = vmatprep.subr.mxu0 0.0
  %773 = vmatpush1.msra.mxu0 0.0
  %774 = vmatprep.subr.mxu0 0.0
  %775 = vmatpush1.msra.mxu0 0.0
  %776 = vmatprep.subr.mxu0 0.0
  %777 = vmatpush1.msra.mxu0 0.0
  %778 = vmatprep.subr.mxu0 0.0
  %779 = vmatpush1.msra.mxu0 0.0
  %780 = vmatprep.subr.mxu0 0.0
  %781 = vmatpush1.msra.mxu0 0.0
  %782 = vmatprep.mubr.f32.mxu0 0.0
  %v783 = vand.u32 %v554, 4294901760
  %v784 = vsub.f32 %v554, %v783
  %785 = vmatmul.mubr.f32.gmra.mrb[0].mxu0 %v784
  %v786 = vpop.f32.mrb[0].mxu0
  %v787 = vadd.f32 %v711, %v786
  %v788 = vpop.f32.mrb[0].mxu0
  %789 = vdwg.mxu0
  %790 = vmatprep.subr.mxu0 0.0
  %v791 = vand.u32 %v543, 4294901760
  %792 = vmatpush1.msra.mxu0 %v791
  %793 = vmatprep.subr.mxu0 0.0
  %v794 = vand.u32 %v544, 4294901760
  %795 = vmatpush1.msra.mxu0 %v794
  %796 = vmatprep.subr.mxu0 0.0
  %797 = vmatpush1.msra.mxu0 0.0
  %798 = vmatprep.subr.mxu0 0.0
  %799 = vmatpush1.msra.mxu0 0.0
  %800 = vmatprep.subr.mxu0 0.0
  %801 = vmatpush1.msra.mxu0 0.0
  %802 = vmatprep.subr.mxu0 0.0
  %803 = vmatpush1.msra.mxu0 0.0
  %804 = vmatprep.subr.mxu0 0.0
  %805 = vmatpush1.msra.mxu0 0.0
  %806 = vmatprep.subr.mxu0 0.0
  %807 = vmatpush1.msra.mxu0 0.0
  %808 = vmatprep.subr.mxu0 0.0
  %809 = vmatpush1.msra.mxu0 0.0
  %810 = vmatprep.subr.mxu0 0.0
  %811 = vmatpush1.msra.mxu0 0.0
  %812 = vmatprep.subr.mxu0 0.0
  %813 = vmatpush1.msra.mxu0 0.0
  %814 = vmatprep.subr.mxu0 0.0
  %815 = vmatpush1.msra.mxu0 0.0
  %816 = vmatprep.subr.mxu0 0.0
  %817 = vmatpush1.msra.mxu0 0.0
  %818 = vmatprep.subr.mxu0 0.0
  %819 = vmatpush1.msra.mxu0 0.0
  %820 = vmatprep.subr.mxu0 0.0
  %821 = vmatpush1.msra.mxu0 0.0
  %822 = vmatprep.subr.mxu0 0.0
  %823 = vmatpush1.msra.mxu0 0.0
  %824 = vmatprep.subr.mxu0 0.0
  %825 = vmatpush1.msra.mxu0 0.0
  %826 = vmatprep.subr.mxu0 0.0
  %827 = vmatpush1.msra.mxu0 0.0
  %828 = vmatprep.subr.mxu0 0.0
  %829 = vmatpush1.msra.mxu0 0.0
  %830 = vmatprep.subr.mxu0 0.0
  %831 = vmatpush1.msra.mxu0 0.0
  %832 = vmatprep.subr.mxu0 0.0
  %833 = vmatpush1.msra.mxu0 0.0
  %834 = vmatprep.subr.mxu0 0.0
  %835 = vmatpush1.msra.mxu0 0.0
  %836 = vmatprep.subr.mxu0 0.0
  %837 = vmatpush1.msra.mxu0 0.0
  %838 = vmatprep.subr.mxu0 0.0
  %839 = vmatpush1.msra.mxu0 0.0
  %840 = vmatprep.subr.mxu0 0.0
  %841 = vmatpush1.msra.mxu0 0.0
  %842 = vmatprep.subr.mxu0 0.0
  %843 = vmatpush1.msra.mxu0 0.0
  %844 = vmatprep.subr.mxu0 0.0
  %845 = vmatpush1.msra.mxu0 0.0
  %846 = vmatprep.subr.mxu0 0.0
  %847 = vmatpush1.msra.mxu0 0.0
  %848 = vmatprep.subr.mxu0 0.0
  %849 = vmatpush1.msra.mxu0 0.0
  %850 = vmatprep.subr.mxu0 0.0
  %851 = vmatpush1.msra.mxu0 0.0
  %852 = vmatprep.subr.mxu0 0.0
  %853 = vmatpush1.msra.mxu0 0.0
  %854 = vmatprep.subr.mxu0 0.0
  %855 = vmatpush1.msra.mxu0 0.0
  %856 = vmatprep.mubr.f32.mxu0 0.0
  %v857 = vand.u32 %v554, 4294901760
  %v858 = vsub.f32 %v554, %v857
  %v859 = vand.u32 %v858, 4294901760
  %860 = vmatmul.mubr.f32.gmra.mrb[0].mxu0 %v859
  %v861 = vpop.f32.mrb[0].mxu0
  %v862 = vadd.f32 %v787, %v861
  %v863 = vpop.f32.mrb[0].mxu0
  %864 = vdwg.mxu0
  %865 = vmatprep.subr.mxu0 0.0
  %v866 = vand.u32 %v543, 4294901760
  %v867 = vsub.f32 %v543, %v866
  %v868 = vand.u32 %v867, 4294901760
  %869 = vmatpush1.msra.mxu0 %v868
  %870 = vmatprep.subr.mxu0 0.0
  %v871 = vand.u32 %v544, 4294901760
  %v872 = vsub.f32 %v544, %v871
  %v873 = vand.u32 %v872, 4294901760
  %874 = vmatpush1.msra.mxu0 %v873
  %875 = vmatprep.subr.mxu0 0.0
  %876 = vmatpush1.msra.mxu0 0.0
  %877 = vmatprep.subr.mxu0 0.0
  %878 = vmatpush1.msra.mxu0 0.0
  %879 = vmatprep.subr.mxu0 0.0
  %880 = vmatpush1.msra.mxu0 0.0
  %881 = vmatprep.subr.mxu0 0.0
  %882 = vmatpush1.msra.mxu0 0.0
  %883 = vmatprep.subr.mxu0 0.0
  %884 = vmatpush1.msra.mxu0 0.0
  %885 = vmatprep.subr.mxu0 0.0
  %886 = vmatpush1.msra.mxu0 0.0
  %887 = vmatprep.subr.mxu0 0.0
  %888 = vmatpush1.msra.mxu0 0.0
  %889 = vmatprep.subr.mxu0 0.0
  %890 = vmatpush1.msra.mxu0 0.0
  %891 = vmatprep.subr.mxu0 0.0
  %892 = vmatpush1.msra.mxu0 0.0
  %893 = vmatprep.subr.mxu0 0.0
  %894 = vmatpush1.msra.mxu0 0.0
  %895 = vmatprep.subr.mxu0 0.0
  %896 = vmatpush1.msra.mxu0 0.0
  %897 = vmatprep.subr.mxu0 0.0
  %898 = vmatpush1.msra.mxu0 0.0
  %899 = vmatprep.subr.mxu0 0.0
  %900 = vmatpush1.msra.mxu0 0.0
  %901 = vmatprep.subr.mxu0 0.0
  %902 = vmatpush1.msra.mxu0 0.0
  %903 = vmatprep.subr.mxu0 0.0
  %904 = vmatpush1.msra.mxu0 0.0
  %905 = vmatprep.subr.mxu0 0.0
  %906 = vmatpush1.msra.mxu0 0.0
  %907 = vmatprep.subr.mxu0 0.0
  %908 = vmatpush1.msra.mxu0 0.0
  %909 = vmatprep.subr.mxu0 0.0
  %910 = vmatpush1.msra.mxu0 0.0
  %911 = vmatprep.subr.mxu0 0.0
  %912 = vmatpush1.msra.mxu0 0.0
  %913 = vmatprep.subr.mxu0 0.0
  %914 = vmatpush1.msra.mxu0 0.0
  %915 = vmatprep.subr.mxu0 0.0
  %916 = vmatpush1.msra.mxu0 0.0
  %917 = vmatprep.subr.mxu0 0.0
  %918 = vmatpush1.msra.mxu0 0.0
  %919 = vmatprep.subr.mxu0 0.0
  %920 = vmatpush1.msra.mxu0 0.0
  %921 = vmatprep.subr.mxu0 0.0
  %922 = vmatpush1.msra.mxu0 0.0
  %923 = vmatprep.subr.mxu0 0.0
  %924 = vmatpush1.msra.mxu0 0.0
  %925 = vmatprep.subr.mxu0 0.0
  %926 = vmatpush1.msra.mxu0 0.0
  %927 = vmatprep.subr.mxu0 0.0
  %928 = vmatpush1.msra.mxu0 0.0
  %929 = vmatprep.subr.mxu0 0.0
  %930 = vmatpush1.msra.mxu0 0.0
  %931 = vmatprep.subr.mxu0 0.0
  %932 = vmatpush1.msra.mxu0 0.0
  %933 = vmatprep.subr.mxu0 0.0
  %934 = vmatpush1.msra.mxu0 0.0
  %935 = vmatprep.mubr.f32.mxu0 0.0
  %v936 = vand.u32 %v554, 4294901760
  %937 = vmatmul.mubr.f32.gmra.mrb[0].mxu0 %v936
  %v938 = vpop.f32.mrb[0].mxu0
  %v939 = vadd.f32 %v862, %v938
  %v940 = vpop.f32.mrb[0].mxu0
  %941 = vdwg.mxu0
  %942 = vmatprep.subr.mxu0 0.0
  %v943 = vand.u32 %v543, 4294901760
  %944 = vmatpush1.msra.mxu0 %v943
  %945 = vmatprep.subr.mxu0 0.0
  %v946 = vand.u32 %v544, 4294901760
  %947 = vmatpush1.msra.mxu0 %v946
  %948 = vmatprep.subr.mxu0 0.0
  %949 = vmatpush1.msra.mxu0 0.0
  %950 = vmatprep.subr.mxu0 0.0
  %951 = vmatpush1.msra.mxu0 0.0
  %952 = vmatprep.subr.mxu0 0.0
  %953 = vmatpush1.msra.mxu0 0.0
  %954 = vmatprep.subr.mxu0 0.0
  %955 = vmatpush1.msra.mxu0 0.0
  %956 = vmatprep.subr.mxu0 0.0
  %957 = vmatpush1.msra.mxu0 0.0
  %958 = vmatprep.subr.mxu0 0.0
  %959 = vmatpush1.msra.mxu0 0.0
  %960 = vmatprep.subr.mxu0 0.0
  %961 = vmatpush1.msra.mxu0 0.0
  %962 = vmatprep.subr.mxu0 0.0
  %963 = vmatpush1.msra.mxu0 0.0
  %964 = vmatprep.subr.mxu0 0.0
  %965 = vmatpush1.msra.mxu0 0.0
  %966 = vmatprep.subr.mxu0 0.0
  %967 = vmatpush1.msra.mxu0 0.0
  %968 = vmatprep.subr.mxu0 0.0
  %969 = vmatpush1.msra.mxu0 0.0
  %970 = vmatprep.subr.mxu0 0.0
  %971 = vmatpush1.msra.mxu0 0.0
  %972 = vmatprep.subr.mxu0 0.0
  %973 = vmatpush1.msra.mxu0 0.0
  %974 = vmatprep.subr.mxu0 0.0
  %975 = vmatpush1.msra.mxu0 0.0
  %976 = vmatprep.subr.mxu0 0.0
  %977 = vmatpush1.msra.mxu0 0.0
  %978 = vmatprep.subr.mxu0 0.0
  %979 = vmatpush1.msra.mxu0 0.0
  %980 = vmatprep.subr.mxu0 0.0
  %981 = vmatpush1.msra.mxu0 0.0
  %982 = vmatprep.subr.mxu0 0.0
  %983 = vmatpush1.msra.mxu0 0.0
  %984 = vmatprep.subr.mxu0 0.0
  %985 = vmatpush1.msra.mxu0 0.0
  %986 = vmatprep.subr.mxu0 0.0
  %987 = vmatpush1.msra.mxu0 0.0
  %988 = vmatprep.subr.mxu0 0.0
  %989 = vmatpush1.msra.mxu0 0.0
  %990 = vmatprep.subr.mxu0 0.0
  %991 = vmatpush1.msra.mxu0 0.0
  %992 = vmatprep.subr.mxu0 0.0
  %993 = vmatpush1.msra.mxu0 0.0
  %994 = vmatprep.subr.mxu0 0.0
  %995 = vmatpush1.msra.mxu0 0.0
  %996 = vmatprep.subr.mxu0 0.0
  %997 = vmatpush1.msra.mxu0 0.0
  %998 = vmatprep.subr.mxu0 0.0
  %999 = vmatpush1.msra.mxu0 0.0
  %1000 = vmatprep.subr.mxu0 0.0
  %1001 = vmatpush1.msra.mxu0 0.0
  %1002 = vmatprep.subr.mxu0 0.0
  %1003 = vmatpush1.msra.mxu0 0.0
  %1004 = vmatprep.subr.mxu0 0.0
  %1005 = vmatpush1.msra.mxu0 0.0
  %1006 = vmatprep.subr.mxu0 0.0
  %1007 = vmatpush1.msra.mxu0 0.0
  %1008 = vmatprep.mubr.f32.mxu0 0.0
  %v1009 = vand.u32 %v554, 4294901760
  %1010 = vmatmul.mubr.f32.gmra.mrb[0].mxu0 %v1009
  %v1011 = vpop.f32.mrb[0].mxu0
  %v1012 = vadd.f32 %v939, %v1011
  %v1013 = vpop.f32.mrb[0].mxu0
  %1014 = vdwg.mxu0
  %v1015 = vtanh.pop %v1012
  %v1016 = vld [vmem:[%s4] sm:$0x1]
  %v1017 = vld [vmem:[#allocation2] sm:$0x1]
  %1019 = vset.pattern.permute.xlu0 0
  %1020 = vperm.xlu0 %1019, %v1017
  %v1021 = vpop.permute.xlu0 %1020
  %v1023 = vlaneseq
  %v1024 = vshrl.u32 %v1023, 7
  %v1025 = vsub.s32 0, %v1024
  %v1026 = vrot.slane %v1021, %v1025
  %vm1027 = vcmask 64512
  %v1029 = vsel %vm1027, %v1016, 0
  %1031 = vmatprep.subr.mxu0 0.0
  %v1032 = vand.u32 %v1015, 4294901760
  %1033 = vmatpush1.msra.mxu0 %v1032
  %1034 = vmatprep.subr.mxu0 0.0
  %1035 = vmatpush1.msra.mxu0 0.0
  %1036 = vmatprep.subr.mxu0 0.0
  %1037 = vmatpush1.msra.mxu0 0.0
  %1038 = vmatprep.subr.mxu0 0.0
  %1039 = vmatpush1.msra.mxu0 0.0
  %1040 = vmatprep.subr.mxu0 0.0
  %1041 = vmatpush1.msra.mxu0 0.0
  %1042 = vmatprep.subr.mxu0 0.0
  %1043 = vmatpush1.msra.mxu0 0.0
  %1044 = vmatprep.subr.mxu0 0.0
  %1045 = vmatpush1.msra.mxu0 0.0
  %1046 = vmatprep.subr.mxu0 0.0
  %1047 = vmatpush1.msra.mxu0 0.0
  %1048 = vmatprep.subr.mxu0 0.0
  %1049 = vmatpush1.msra.mxu0 0.0
  %1050 = vmatprep.subr.mxu0 0.0
  %1051 = vmatpush1.msra.mxu0 0.0
  %1052 = vmatprep.subr.mxu0 0.0
  %1053 = vmatpush1.msra.mxu0 0.0
  %1054 = vmatprep.subr.mxu0 0.0
  %1055 = vmatpush1.msra.mxu0 0.0
  %1056 = vmatprep.subr.mxu0 0.0
  %1057 = vmatpush1.msra.mxu0 0.0
  %1058 = vmatprep.subr.mxu0 0.0
  %1059 = vmatpush1.msra.mxu0 0.0
  %1060 = vmatprep.subr.mxu0 0.0
  %1061 = vmatpush1.msra.mxu0 0.0
  %1062 = vmatprep.subr.mxu0 0.0
  %1063 = vmatpush1.msra.mxu0 0.0
  %1064 = vmatprep.subr.mxu0 0.0
  %1065 = vmatpush1.msra.mxu0 0.0
  %1066 = vmatprep.subr.mxu0 0.0
  %1067 = vmatpush1.msra.mxu0 0.0
  %1068 = vmatprep.subr.mxu0 0.0
  %1069 = vmatpush1.msra.mxu0 0.0
  %1070 = vmatprep.subr.mxu0 0.0
  %1071 = vmatpush1.msra.mxu0 0.0
  %1072 = vmatprep.subr.mxu0 0.0
  %1073 = vmatpush1.msra.mxu0 0.0
  %1074 = vmatprep.subr.mxu0 0.0
  %1075 = vmatpush1.msra.mxu0 0.0
  %1076 = vmatprep.subr.mxu0 0.0
  %1077 = vmatpush1.msra.mxu0 0.0
  %1078 = vmatprep.subr.mxu0 0.0
  %1079 = vmatpush1.msra.mxu0 0.0
  %1080 = vmatprep.subr.mxu0 0.0
  %1081 = vmatpush1.msra.mxu0 0.0
  %1082 = vmatprep.subr.mxu0 0.0
  %1083 = vmatpush1.msra.mxu0 0.0
  %1084 = vmatprep.subr.mxu0 0.0
  %1085 = vmatpush1.msra.mxu0 0.0
  %1086 = vmatprep.subr.mxu0 0.0
  %1087 = vmatpush1.msra.mxu0 0.0
  %1088 = vmatprep.subr.mxu0 0.0
  %1089 = vmatpush1.msra.mxu0 0.0
  %1090 = vmatprep.subr.mxu0 0.0
  %1091 = vmatpush1.msra.mxu0 0.0
  %1092 = vmatprep.subr.mxu0 0.0
  %1093 = vmatpush1.msra.mxu0 0.0
  %1094 = vmatprep.subr.mxu0 0.0
  %1095 = vmatpush1.msra.mxu0 0.0
  %1096 = vmatprep.mubr.f32.mxu0 0.0
  %v1097 = vand.u32 %v1029, 4294901760
  %v1098 = vsub.f32 %v1029, %v1097
  %v1099 = vand.u32 %v1098, 4294901760
  %v1100 = vsub.f32 %v1098, %v1099
  %v1101 = vand.u32 %v1100, 4294901760
  %1102 = vmatmul.mubr.f32.gmra.mrb[0].mxu0 %v1101
  %v1103 = vpop.f32.mrb[0].mxu0
  %v1104 = vadd.f32 %v1026, %v1103
  %v1105 = vpop.f32.mrb[0].mxu0
  %1106 = vdwg.mxu0
  %1107 = vmatprep.subr.mxu0 0.0
  %v1108 = vand.u32 %v1015, 4294901760
  %v1109 = vsub.f32 %v1015, %v1108
  %v1110 = vand.u32 %v1109, 4294901760
  %v1111 = vsub.f32 %v1109, %v1110
  %v1112 = vand.u32 %v1111, 4294901760
  %1113 = vmatpush1.msra.mxu0 %v1112
  %1114 = vmatprep.subr.mxu0 0.0
  %1115 = vmatpush1.msra.mxu0 0.0
  %1116 = vmatprep.subr.mxu0 0.0
  %1117 = vmatpush1.msra.mxu0 0.0
  %1118 = vmatprep.subr.mxu0 0.0
  %1119 = vmatpush1.msra.mxu0 0.0
  %1120 = vmatprep.subr.mxu0 0.0
  %1121 = vmatpush1.msra.mxu0 0.0
  %1122 = vmatprep.subr.mxu0 0.0
  %1123 = vmatpush1.msra.mxu0 0.0
  %1124 = vmatprep.subr.mxu0 0.0
  %1125 = vmatpush1.msra.mxu0 0.0
  %1126 = vmatprep.subr.mxu0 0.0
  %1127 = vmatpush1.msra.mxu0 0.0
  %1128 = vmatprep.subr.mxu0 0.0
  %1129 = vmatpush1.msra.mxu0 0.0
  %1130 = vmatprep.subr.mxu0 0.0
  %1131 = vmatpush1.msra.mxu0 0.0
  %1132 = vmatprep.subr.mxu0 0.0
  %1133 = vmatpush1.msra.mxu0 0.0
  %1134 = vmatprep.subr.mxu0 0.0
  %1135 = vmatpush1.msra.mxu0 0.0
  %1136 = vmatprep.subr.mxu0 0.0
  %1137 = vmatpush1.msra.mxu0 0.0
  %1138 = vmatprep.subr.mxu0 0.0
  %1139 = vmatpush1.msra.mxu0 0.0
  %1140 = vmatprep.subr.mxu0 0.0
  %1141 = vmatpush1.msra.mxu0 0.0
  %1142 = vmatprep.subr.mxu0 0.0
  %1143 = vmatpush1.msra.mxu0 0.0
  %1144 = vmatprep.subr.mxu0 0.0
  %1145 = vmatpush1.msra.mxu0 0.0
  %1146 = vmatprep.subr.mxu0 0.0
  %1147 = vmatpush1.msra.mxu0 0.0
  %1148 = vmatprep.subr.mxu0 0.0
  %1149 = vmatpush1.msra.mxu0 0.0
  %1150 = vmatprep.subr.mxu0 0.0
  %1151 = vmatpush1.msra.mxu0 0.0
  %1152 = vmatprep.subr.mxu0 0.0
  %1153 = vmatpush1.msra.mxu0 0.0
  %1154 = vmatprep.subr.mxu0 0.0
  %1155 = vmatpush1.msra.mxu0 0.0
  %1156 = vmatprep.subr.mxu0 0.0
  %1157 = vmatpush1.msra.mxu0 0.0
  %1158 = vmatprep.subr.mxu0 0.0
  %1159 = vmatpush1.msra.mxu0 0.0
  %1160 = vmatprep.subr.mxu0 0.0
  %1161 = vmatpush1.msra.mxu0 0.0
  %1162 = vmatprep.subr.mxu0 0.0
  %1163 = vmatpush1.msra.mxu0 0.0
  %1164 = vmatprep.subr.mxu0 0.0
  %1165 = vmatpush1.msra.mxu0 0.0
  %1166 = vmatprep.subr.mxu0 0.0
  %1167 = vmatpush1.msra.mxu0 0.0
  %1168 = vmatprep.subr.mxu0 0.0
  %1169 = vmatpush1.msra.mxu0 0.0
  %1170 = vmatprep.subr.mxu0 0.0
  %1171 = vmatpush1.msra.mxu0 0.0
  %1172 = vmatprep.subr.mxu0 0.0
  %1173 = vmatpush1.msra.mxu0 0.0
  %1174 = vmatprep.subr.mxu0 0.0
  %1175 = vmatpush1.msra.mxu0 0.0
  %1176 = vmatprep.mubr.f32.mxu0 0.0
  %v1177 = vand.u32 %v1029, 4294901760
  %1178 = vmatmul.mubr.f32.gmra.mrb[0].mxu0 %v1177
  %v1179 = vpop.f32.mrb[0].mxu0
  %v1180 = vadd.f32 %v1104, %v1179
  %v1181 = vpop.f32.mrb[0].mxu0
  %1182 = vdwg.mxu0
  %1183 = vmatprep.subr.mxu0 0.0
  %v1184 = vand.u32 %v1015, 4294901760
  %v1185 = vsub.f32 %v1015, %v1184
  %1186 = vmatpush1.msra.mxu0 %v1185
  %1187 = vmatprep.subr.mxu0 0.0
  %1188 = vmatpush1.msra.mxu0 0.0
  %1189 = vmatprep.subr.mxu0 0.0
  %1190 = vmatpush1.msra.mxu0 0.0
  %1191 = vmatprep.subr.mxu0 0.0
  %1192 = vmatpush1.msra.mxu0 0.0
  %1193 = vmatprep.subr.mxu0 0.0
  %1194 = vmatpush1.msra.mxu0 0.0
  %1195 = vmatprep.subr.mxu0 0.0
  %1196 = vmatpush1.msra.mxu0 0.0
  %1197 = vmatprep.subr.mxu0 0.0
  %1198 = vmatpush1.msra.mxu0 0.0
  %1199 = vmatprep.subr.mxu0 0.0
  %1200 = vmatpush1.msra.mxu0 0.0
  %1201 = vmatprep.subr.mxu0 0.0
  %1202 = vmatpush1.msra.mxu0 0.0
  %1203 = vmatprep.subr.mxu0 0.0
  %1204 = vmatpush1.msra.mxu0 0.0
  %1205 = vmatprep.subr.mxu0 0.0
  %1206 = vmatpush1.msra.mxu0 0.0
  %1207 = vmatprep.subr.mxu0 0.0
  %1208 = vmatpush1.msra.mxu0 0.0
  %1209 = vmatprep.subr.mxu0 0.0
  %1210 = vmatpush1.msra.mxu0 0.0
  %1211 = vmatprep.subr.mxu0 0.0
  %1212 = vmatpush1.msra.mxu0 0.0
  %1213 = vmatprep.subr.mxu0 0.0
  %1214 = vmatpush1.msra.mxu0 0.0
  %1215 = vmatprep.subr.mxu0 0.0
  %1216 = vmatpush1.msra.mxu0 0.0
  %1217 = vmatprep.subr.mxu0 0.0
  %1218 = vmatpush1.msra.mxu0 0.0
  %1219 = vmatprep.subr.mxu0 0.0
  %1220 = vmatpush1.msra.mxu0 0.0
  %1221 = vmatprep.subr.mxu0 0.0
  %1222 = vmatpush1.msra.mxu0 0.0
  %1223 = vmatprep.subr.mxu0 0.0
  %1224 = vmatpush1.msra.mxu0 0.0
  %1225 = vmatprep.subr.mxu0 0.0
  %1226 = vmatpush1.msra.mxu0 0.0
  %1227 = vmatprep.subr.mxu0 0.0
  %1228 = vmatpush1.msra.mxu0 0.0
  %1229 = vmatprep.subr.mxu0 0.0
  %1230 = vmatpush1.msra.mxu0 0.0
  %1231 = vmatprep.subr.mxu0 0.0
  %1232 = vmatpush1.msra.mxu0 0.0
  %1233 = vmatprep.subr.mxu0 0.0
  %1234 = vmatpush1.msra.mxu0 0.0
  %1235 = vmatprep.subr.mxu0 0.0
  %1236 = vmatpush1.msra.mxu0 0.0
  %1237 = vmatprep.subr.mxu0 0.0
  %1238 = vmatpush1.msra.mxu0 0.0
  %1239 = vmatprep.subr.mxu0 0.0
  %1240 = vmatpush1.msra.mxu0 0.0
  %1241 = vmatprep.subr.mxu0 0.0
  %1242 = vmatpush1.msra.mxu0 0.0
  %1243 = vmatprep.subr.mxu0 0.0
  %1244 = vmatpush1.msra.mxu0 0.0
  %1245 = vmatprep.subr.mxu0 0.0
  %1246 = vmatpush1.msra.mxu0 0.0
  %1247 = vmatprep.subr.mxu0 0.0
  %1248 = vmatpush1.msra.mxu0 0.0
  %1249 = vmatprep.mubr.f32.mxu0 0.0
  %v1250 = vand.u32 %v1029, 4294901760
  %v1251 = vsub.f32 %v1029, %v1250
  %1252 = vmatmul.mubr.f32.gmra.mrb[0].mxu0 %v1251
  %v1253 = vpop.f32.mrb[0].mxu0
  %v1254 = vadd.f32 %v1180, %v1253
  %v1255 = vpop.f32.mrb[0].mxu0
  %1256 = vdwg.mxu0
  %1257 = vmatprep.subr.mxu0 0.0
  %v1258 = vand.u32 %v1015, 4294901760
  %1259 = vmatpush1.msra.mxu0 %v1258
  %1260 = vmatprep.subr.mxu0 0.0
  %1261 = vmatpush1.msra.mxu0 0.0
  %1262 = vmatprep.subr.mxu0 0.0
  %1263 = vmatpush1.msra.mxu0 0.0
  %1264 = vmatprep.subr.mxu0 0.0
  %1265 = vmatpush1.msra.mxu0 0.0
  %1266 = vmatprep.subr.mxu0 0.0
  %1267 = vmatpush1.msra.mxu0 0.0
  %1268 = vmatprep.subr.mxu0 0.0
  %1269 = vmatpush1.msra.mxu0 0.0
  %1270 = vmatprep.subr.mxu0 0.0
  %1271 = vmatpush1.msra.mxu0 0.0
  %1272 = vmatprep.subr.mxu0 0.0
  %1273 = vmatpush1.msra.mxu0 0.0
  %1274 = vmatprep.subr.mxu0 0.0
  %1275 = vmatpush1.msra.mxu0 0.0
  %1276 = vmatprep.subr.mxu0 0.0
  %1277 = vmatpush1.msra.mxu0 0.0
  %1278 = vmatprep.subr.mxu0 0.0
  %1279 = vmatpush1.msra.mxu0 0.0
  %1280 = vmatprep.subr.mxu0 0.0
  %1281 = vmatpush1.msra.mxu0 0.0
  %1282 = vmatprep.subr.mxu0 0.0
  %1283 = vmatpush1.msra.mxu0 0.0
  %1284 = vmatprep.subr.mxu0 0.0
  %1285 = vmatpush1.msra.mxu0 0.0
  %1286 = vmatprep.subr.mxu0 0.0
  %1287 = vmatpush1.msra.mxu0 0.0
  %1288 = vmatprep.subr.mxu0 0.0
  %1289 = vmatpush1.msra.mxu0 0.0
  %1290 = vmatprep.subr.mxu0 0.0
  %1291 = vmatpush1.msra.mxu0 0.0
  %1292 = vmatprep.subr.mxu0 0.0
  %1293 = vmatpush1.msra.mxu0 0.0
  %1294 = vmatprep.subr.mxu0 0.0
  %1295 = vmatpush1.msra.mxu0 0.0
  %1296 = vmatprep.subr.mxu0 0.0
  %1297 = vmatpush1.msra.mxu0 0.0
  %1298 = vmatprep.subr.mxu0 0.0
  %1299 = vmatpush1.msra.mxu0 0.0
  %1300 = vmatprep.subr.mxu0 0.0
  %1301 = vmatpush1.msra.mxu0 0.0
  %1302 = vmatprep.subr.mxu0 0.0
  %1303 = vmatpush1.msra.mxu0 0.0
  %1304 = vmatprep.subr.mxu0 0.0
  %1305 = vmatpush1.msra.mxu0 0.0
  %1306 = vmatprep.subr.mxu0 0.0
  %1307 = vmatpush1.msra.mxu0 0.0
  %1308 = vmatprep.subr.mxu0 0.0
  %1309 = vmatpush1.msra.mxu0 0.0
  %1310 = vmatprep.subr.mxu0 0.0
  %1311 = vmatpush1.msra.mxu0 0.0
  %1312 = vmatprep.subr.mxu0 0.0
  %1313 = vmatpush1.msra.mxu0 0.0
  %1314 = vmatprep.subr.mxu0 0.0
  %1315 = vmatpush1.msra.mxu0 0.0
  %1316 = vmatprep.subr.mxu0 0.0
  %1317 = vmatpush1.msra.mxu0 0.0
  %1318 = vmatprep.subr.mxu0 0.0
  %1319 = vmatpush1.msra.mxu0 0.0
  %1320 = vmatprep.subr.mxu0 0.0
  %1321 = vmatpush1.msra.mxu0 0.0
  %1322 = vmatprep.mubr.f32.mxu0 0.0
  %v1323 = vand.u32 %v1029, 4294901760
  %v1324 = vsub.f32 %v1029, %v1323
  %v1325 = vand.u32 %v1324, 4294901760
  %1326 = vmatmul.mubr.f32.gmra.mrb[0].mxu0 %v1325
  %v1327 = vpop.f32.mrb[0].mxu0
  %v1328 = vadd.f32 %v1254, %v1327
  %v1329 = vpop.f32.mrb[0].mxu0
  %1330 = vdwg.mxu0
  %1331 = vmatprep.subr.mxu0 0.0
  %v1332 = vand.u32 %v1015, 4294901760
  %v1333 = vsub.f32 %v1015, %v1332
  %v1334 = vand.u32 %v1333, 4294901760
  %1335 = vmatpush1.msra.mxu0 %v1334
  %1336 = vmatprep.subr.mxu0 0.0
  %1337 = vmatpush1.msra.mxu0 0.0
  %1338 = vmatprep.subr.mxu0 0.0
  %1339 = vmatpush1.msra.mxu0 0.0
  %1340 = vmatprep.subr.mxu0 0.0
  %1341 = vmatpush1.msra.mxu0 0.0
  %1342 = vmatprep.subr.mxu0 0.0
  %1343 = vmatpush1.msra.mxu0 0.0
  %1344 = vmatprep.subr.mxu0 0.0
  %1345 = vmatpush1.msra.mxu0 0.0
  %1346 = vmatprep.subr.mxu0 0.0
  %1347 = vmatpush1.msra.mxu0 0.0
  %1348 = vmatprep.subr.mxu0 0.0
  %1349 = vmatpush1.msra.mxu0 0.0
  %1350 = vmatprep.subr.mxu0 0.0
  %1351 = vmatpush1.msra.mxu0 0.0
  %1352 = vmatprep.subr.mxu0 0.0
  %1353 = vmatpush1.msra.mxu0 0.0
  %1354 = vmatprep.subr.mxu0 0.0
  %1355 = vmatpush1.msra.mxu0 0.0
  %1356 = vmatprep.subr.mxu0 0.0
  %1357 = vmatpush1.msra.mxu0 0.0
  %1358 = vmatprep.subr.mxu0 0.0
  %1359 = vmatpush1.msra.mxu0 0.0
  %1360 = vmatprep.subr.mxu0 0.0
  %1361 = vmatpush1.msra.mxu0 0.0
  %1362 = vmatprep.subr.mxu0 0.0
  %1363 = vmatpush1.msra.mxu0 0.0
  %1364 = vmatprep.subr.mxu0 0.0
  %1365 = vmatpush1.msra.mxu0 0.0
  %1366 = vmatprep.subr.mxu0 0.0
  %1367 = vmatpush1.msra.mxu0 0.0
  %1368 = vmatprep.subr.mxu0 0.0
  %1369 = vmatpush1.msra.mxu0 0.0
  %1370 = vmatprep.subr.mxu0 0.0
  %1371 = vmatpush1.msra.mxu0 0.0
  %1372 = vmatprep.subr.mxu0 0.0
  %1373 = vmatpush1.msra.mxu0 0.0
  %1374 = vmatprep.subr.mxu0 0.0
  %1375 = vmatpush1.msra.mxu0 0.0
  %1376 = vmatprep.subr.mxu0 0.0
  %1377 = vmatpush1.msra.mxu0 0.0
  %1378 = vmatprep.subr.mxu0 0.0
  %1379 = vmatpush1.msra.mxu0 0.0
  %1380 = vmatprep.subr.mxu0 0.0
  %1381 = vmatpush1.msra.mxu0 0.0
  %1382 = vmatprep.subr.mxu0 0.0
  %1383 = vmatpush1.msra.mxu0 0.0
  %1384 = vmatprep.subr.mxu0 0.0
  %1385 = vmatpush1.msra.mxu0 0.0
  %1386 = vmatprep.subr.mxu0 0.0
  %1387 = vmatpush1.msra.mxu0 0.0
  %1388 = vmatprep.subr.mxu0 0.0
  %1389 = vmatpush1.msra.mxu0 0.0
  %1390 = vmatprep.subr.mxu0 0.0
  %1391 = vmatpush1.msra.mxu0 0.0
  %1392 = vmatprep.subr.mxu0 0.0
  %1393 = vmatpush1.msra.mxu0 0.0
  %1394 = vmatprep.subr.mxu0 0.0
  %1395 = vmatpush1.msra.mxu0 0.0
  %1396 = vmatprep.subr.mxu0 0.0
  %1397 = vmatpush1.msra.mxu0 0.0
  %1398 = vmatprep.mubr.f32.mxu0 0.0
  %v1399 = vand.u32 %v1029, 4294901760
  %1400 = vmatmul.mubr.f32.gmra.mrb[0].mxu0 %v1399
  %v1401 = vpop.f32.mrb[0].mxu0
  %v1402 = vadd.f32 %v1328, %v1401
  %v1403 = vpop.f32.mrb[0].mxu0
  %1404 = vdwg.mxu0
  %1405 = vmatprep.subr.mxu0 0.0
  %v1406 = vand.u32 %v1015, 4294901760
  %1407 = vmatpush1.msra.mxu0 %v1406
  %1408 = vmatprep.subr.mxu0 0.0
  %1409 = vmatpush1.msra.mxu0 0.0
  %1410 = vmatprep.subr.mxu0 0.0
  %1411 = vmatpush1.msra.mxu0 0.0
  %1412 = vmatprep.subr.mxu0 0.0
  %1413 = vmatpush1.msra.mxu0 0.0
  %1414 = vmatprep.subr.mxu0 0.0
  %1415 = vmatpush1.msra.mxu0 0.0
  %1416 = vmatprep.subr.mxu0 0.0
  %1417 = vmatpush1.msra.mxu0 0.0
  %1418 = vmatprep.subr.mxu0 0.0
  %1419 = vmatpush1.msra.mxu0 0.0
  %1420 = vmatprep.subr.mxu0 0.0
  %1421 = vmatpush1.msra.mxu0 0.0
  %1422 = vmatprep.subr.mxu0 0.0
  %1423 = vmatpush1.msra.mxu0 0.0
  %1424 = vmatprep.subr.mxu0 0.0
  %1425 = vmatpush1.msra.mxu0 0.0
  %1426 = vmatprep.subr.mxu0 0.0
  %1427 = vmatpush1.msra.mxu0 0.0
  %1428 = vmatprep.subr.mxu0 0.0
  %1429 = vmatpush1.msra.mxu0 0.0
  %1430 = vmatprep.subr.mxu0 0.0
  %1431 = vmatpush1.msra.mxu0 0.0
  %1432 = vmatprep.subr.mxu0 0.0
  %1433 = vmatpush1.msra.mxu0 0.0
  %1434 = vmatprep.subr.mxu0 0.0
  %1435 = vmatpush1.msra.mxu0 0.0
  %1436 = vmatprep.subr.mxu0 0.0
  %1437 = vmatpush1.msra.mxu0 0.0
  %1438 = vmatprep.subr.mxu0 0.0
  %1439 = vmatpush1.msra.mxu0 0.0
  %1440 = vmatprep.subr.mxu0 0.0
  %1441 = vmatpush1.msra.mxu0 0.0
  %1442 = vmatprep.subr.mxu0 0.0
  %1443 = vmatpush1.msra.mxu0 0.0
  %1444 = vmatprep.subr.mxu0 0.0
  %1445 = vmatpush1.msra.mxu0 0.0
  %1446 = vmatprep.subr.mxu0 0.0
  %1447 = vmatpush1.msra.mxu0 0.0
  %1448 = vmatprep.subr.mxu0 0.0
  %1449 = vmatpush1.msra.mxu0 0.0
  %1450 = vmatprep.subr.mxu0 0.0
  %1451 = vmatpush1.msra.mxu0 0.0
  %1452 = vmatprep.subr.mxu0 0.0
  %1453 = vmatpush1.msra.mxu0 0.0
  %1454 = vmatprep.subr.mxu0 0.0
  %1455 = vmatpush1.msra.mxu0 0.0
  %1456 = vmatprep.subr.mxu0 0.0
  %1457 = vmatpush1.msra.mxu0 0.0
  %1458 = vmatprep.subr.mxu0 0.0
  %1459 = vmatpush1.msra.mxu0 0.0
  %1460 = vmatprep.subr.mxu0 0.0
  %1461 = vmatpush1.msra.mxu0 0.0
  %1462 = vmatprep.subr.mxu0 0.0
  %1463 = vmatpush1.msra.mxu0 0.0
  %1464 = vmatprep.subr.mxu0 0.0
  %1465 = vmatpush1.msra.mxu0 0.0
  %1466 = vmatprep.subr.mxu0 0.0
  %1467 = vmatpush1.msra.mxu0 0.0
  %1468 = vmatprep.subr.mxu0 0.0
  %1469 = vmatpush1.msra.mxu0 0.0
  %1470 = vmatprep.mubr.f32.mxu0 0.0
  %v1471 = vand.u32 %v1029, 4294901760
  %1472 = vmatmul.mubr.f32.gmra.mrb[0].mxu0 %v1471
  %v1473 = vpop.f32.mrb[0].mxu0
  %v1474 = vadd.f32 %v1402, %v1473
  %v1475 = vpop.f32.mrb[0].mxu0
  %1476 = vdwg.mxu0
  %1477 = vst [vmem:[%s7] sm:$0x1] %v1474
  // Predicated region
  $region30: #{filter_network.1} parent=0 // pred_check
    _
  $region31: #{filter_network.1} parent=0 // pred_check_branch
    %1479 = sbr.rel (0) target = $region33
  $region32: #{filter_network.1} parent=0 // pred_region
    _
  $region33: #{filter_network.1} parent=0 // pred_fallthru
    _
  // Predicated region
  $region34: #{filter_network.1} parent=0 // pred_check
    _
  $region35: #{filter_network.1} parent=0 // pred_check_branch
    %1481 = sbr.rel (0) target = $region37
  $region36: #{filter_network.1} parent=0 // pred_region
    _
  $region37: #{filter_network.1} parent=0 // pred_fallthru
    _

</llo_original>
